<compile_context>
chip_gen: v6e
topology: v6e:2x2x1
jax: 0.10.0
libtpu: 0.0.40
codegen_flags: <defaults>
</compile_context>

<pallas_src>
import functools

import jax
import jax.numpy as jnp
from jax.experimental import pallas as pl
from jax.experimental.pallas import tpu as pltpu


# ----------------------------- configuration -----------------------------
NUM_LAYERS = 4          # total Linear layers (module's `num_layers`, small demo)
HIDDEN_DIM = 128        # hidden width (MXU/lane friendly demo size)
NUM_FRAMES = 8
N_POINTS = 256


def _tpu_generation():
    """Best-effort TPU generation sniff ('v5'/'v6'/'v7') for tuning defaults."""
    try:
        kind = jax.devices()[0].device_kind.lower()
    except Exception:
        return None
    for gen in ("v7", "v6", "v5"):
        if gen in kind:
            return gen
    return None


def _default_first_layer_on_mxu(generation):
    # v5-class: the 128^2 MXU is the slower, binding unit -> keep the K=3
    # first layer on the VPU.  v6e/v7x: the 256^2 MXU is only quarter-filled
    # at H=128 and has slack while f32 VALU work (no FMA) likely binds ->
    # run the first layer on the MXU (K zero-padded 3->8, ~T/8 extra pushes).
    return generation != "v5"


def _choose_tile_n(n, generation):
    """Lane-axis tile size.

    Large tiles amortize the ~0.35us per-grid-step overhead; capped per
    generation so the [H, T] temporaries stay comfortably inside scoped VMEM
    (v5e has the smallest scoped default, v7x the smallest physical VMEM).
    The grid is kept at >= 2 steps whenever possible so both v7x TensorCores
    get work.
    """
    caps = {"v5": 2048, "v6": 8192, "v7": 4096}
    max_tile = caps.get(generation, 4096)
    n128 = ((n + 127) // 128) * 128
    if n128 <= 128:
        return 128
    num_tiles = max(2, -(-n128 // max_tile))
    if num_tiles % 2:
        num_tiles += 1                 # even #steps -> both v7x cores stay busy
    per_tile = -(-n128 // num_tiles)
    return ((per_tile + 127) // 128) * 128


def _vmem_limit_bytes(tile_n, hidden, num_mid, compute_bytes):
    """Scoped-VMEM request: h temporaries + double-buffered I/O + weights."""
    act = hidden * tile_n * (4 + compute_bytes + 4)   # h f32 + cast copy + dot result
    io = 2 * 2 * (8 * tile_n * 4)                     # x / out blocks (8-sublane padded), 2 buffers
    wts = ((num_mid * hidden * hidden + 4 * hidden) * compute_bytes
           + hidden * 8 * 4 + (num_mid * hidden + 4) * 128 * 4)
    total = act + io + wts
    return int(min(max(2 * total, 24 << 20), 48 << 20))


# ------------------------------ Pallas kernel -----------------------------
def barf_mlp_kernel(x_ref, w0b_ref, wmid_ref, bmid_ref, wlast_ref, blast_ref,
                    out_ref, *, num_mid, first_layer_on_mxu):
    # x:    [3, T]     f32, lane axis = points
    # w0b:  [H, 8]     f32: cols 0..2 = pose-folded weight, col 3 = folded
    #                  bias, cols 4..7 = zeros (K padding for the MXU path)
    # wmid: [L-2, H, H], wlast: [4, H]       (f32 or bf16 operands)
    # bmid: [L-2, H, 128], blast: [4, 128]   f32, lane-replicated biases
    x = x_ref[...]
    w0b = w0b_ref[...]
    t = x.shape[1]
    lane_reps = t // 128

    if first_layer_on_mxu:
        # K padded 3 -> 8, bias folded in as a ones row: one small MXU matmul,
        # zero VALU broadcast work (v6e/v7x, where the MXU has slack).
        x_aug = jnp.concatenate(
            [x, jnp.ones((1, t), jnp.float32), jnp.zeros((4, t), jnp.float32)],
            axis=0)                                              # [8, T]
        h = jnp.dot(w0b, x_aug, preferred_element_type=jnp.float32)
    else:
        # Rank-1 VPU broadcast-FMAs (v5-class, where the MXU binds first and
        # the degenerate K=3 contraction would waste its pushes).
        h = (w0b[:, 0:1] * x[0:1, :]
             + w0b[:, 1:2] * x[1:2, :]
             + w0b[:, 2:3] * x[2:3, :]
             + w0b[:, 3:4])
    h = jnp.maximum(h, 0.0)

    # Hidden layers: [H, H] @ [H, T] on the MXU, f32 accumulation.  Biases are
    # lane-replicated to width 128 so the add is plain vreg reuse (jnp.tile of
    # identical vregs), not a lane-broadcast relayout.
    for l in range(num_mid):
        h = (jnp.dot(wmid_ref[l], h.astype(wmid_ref.dtype),
                     preferred_element_type=jnp.float32)
             + jnp.tile(bmid_ref[l], (1, lane_reps)))
        h = jnp.maximum(h, 0.0)

    # Output layer -> [4, T]: sigmoid on rows 0..2 (rgb), relu on row 3.
    # TODO(synk): if a bundle dump shows the MXU push slot saturating (most
    # likely on v5e), this 4-row layer could move to four VPU/XLU
    # sublane-reduction rows; kept on the MXU since VALU is the more likely
    # binding slot once the first layer also runs there.
    y = (jnp.dot(wlast_ref[...], h.astype(wlast_ref.dtype),
                 preferred_element_type=jnp.float32)
         + jnp.tile(blast_ref[...], (1, lane_reps)))
    row = jax.lax.broadcasted_iota(jnp.int32, y.shape, 0)
    out_ref[...] = jnp.where(row < 3, jax.nn.sigmoid(y), jnp.maximum(y, 0.0))


def barf_pallas(points_fm, w0b, wmid, bmid, wlast, blast, *,
                first_layer_on_mxu=None, buffered_weights=True):
    """points_fm: [3, N] feature-major points. Returns [4, N] (f32)."""
    three, n = points_fm.shape
    assert three == 3
    hidden = w0b.shape[0]
    num_mid = wmid.shape[0]
    gen = _tpu_generation()
    if first_layer_on_mxu is None:
        first_layer_on_mxu = _default_first_layer_on_mxu(gen)

    tile_n = _choose_tile_n(n, gen)
    n_pad = ((n + tile_n - 1) // tile_n) * tile_n
    if n_pad != n:
        points_fm = jnp.pad(points_fm, ((0, 0), (0, n_pad - n)))
    grid = (n_pad // tile_n,)

    # Operands whose block index never changes need only a single VMEM buffer.
    wmode = pl.Buffered(1) if buffered_weights else None
    compute_bytes = jnp.dtype(wmid.dtype).itemsize

    out = pl.pallas_call(
        functools.partial(barf_mlp_kernel, num_mid=num_mid,
                          first_layer_on_mxu=first_layer_on_mxu),
        out_shape=jax.ShapeDtypeStruct((4, n_pad), jnp.float32),
        grid=grid,
        in_specs=[
            pl.BlockSpec((3, tile_n), lambda i: (0, i)),
            pl.BlockSpec((hidden, 8), lambda i: (0, 0), pipeline_mode=wmode),
            pl.BlockSpec((num_mid, hidden, hidden), lambda i: (0, 0, 0),
                         pipeline_mode=wmode),
            pl.BlockSpec((num_mid, hidden, 128), lambda i: (0, 0, 0),
                         pipeline_mode=wmode),
            pl.BlockSpec((4, hidden), lambda i: (0, 0), pipeline_mode=wmode),
            pl.BlockSpec((4, 128), lambda i: (0, 0), pipeline_mode=wmode),
        ],
        out_specs=pl.BlockSpec((4, tile_n), lambda i: (0, i)),
        compiler_params=pltpu.CompilerParams(
            dimension_semantics=("parallel",),
            vmem_limit_bytes=_vmem_limit_bytes(tile_n, hidden, num_mid,
                                               compute_bytes)),
    )(points_fm, w0b, wmid, bmid, wlast, blast)
    return out[:, :n]


# ------------------------------ JAX glue -----------------------------------
def rotation_matrix(rotation):
    """Rodrigues formula, identical to the PyTorch reference."""
    angle = jnp.linalg.norm(rotation)
    axis = rotation / (angle + 1e-8)
    K = jnp.array([[0.0, -axis[2], axis[1]],
                   [axis[2], 0.0, -axis[0]],
                   [-axis[1], axis[0], 0.0]], dtype=jnp.float32)
    I = jnp.eye(3, dtype=jnp.float32)
    return I + jnp.sin(angle) * K + (1.0 - jnp.cos(angle)) * (K @ K)


def prepare_params(weights, biases, use_bf16=False):
    """One-time prep, hoisted out of the per-call path.

    weights/biases follow the PyTorch module:
      weights[0]: (H, 3), weights[1..L-2]: (H, H), weights[L-1]: (4, H)
    Biases added inside the kernel are pre-broadcast to lane width 128 so the
    kernel does plain vreg reuse instead of per-tile lane-broadcast relayouts.
    bf16 operands are worthwhile on every generation (v5e's 128x128 MXU is
    native bf16); keep the f32 path for validation.
    """
    assert len(weights) >= 3, "kernel assumes num_layers >= 3"
    cdt = jnp.bfloat16 if use_bf16 else jnp.float32
    hidden = weights[0].shape[0]
    num_mid = len(weights) - 2
    bmid = jnp.stack(biases[1:-1]).astype(jnp.float32)          # (L-2, H)
    return dict(
        w0=weights[0].astype(jnp.float32),                      # (H, 3)
        b0=biases[0].astype(jnp.float32),                       # (H,)
        wmid=jnp.stack(weights[1:-1]).astype(cdt),               # (L-2, H, H)
        bmid=jnp.broadcast_to(bmid[:, :, None],
                              (num_mid, hidden, 128)).astype(jnp.float32),
        wlast=weights[-1].astype(cdt),                           # (4, H)
        blast=jnp.broadcast_to(biases[-1].astype(jnp.float32)[:, None],
                               (4, 128)),                        # (4, 128)
    )


def _fold_pose(params, pose):
    """Fold the rigid transform into the first Linear:
         W0 (R x + t) + b0 = (W0 R) x + (W0 t + b0)
    Returns the [H, 8] first-layer operand (3 weight cols, 1 bias col,
    4 zero K-padding cols for the MXU first-layer path)."""
    R = rotation_matrix(pose[:3])
    t = pose[3:]
    w0_fm = params["w0"] @ R                                    # (H, 3)
    b0_fm = params["w0"] @ t + params["b0"]                     # (H,)
    zeros = jnp.zeros((w0_fm.shape[0], 4), jnp.float32)
    return jnp.concatenate([w0_fm, b0_fm[:, None], zeros], axis=1)   # (H, 8)


@functools.partial(jax.jit,
                   static_argnames=("first_layer_on_mxu", "buffered_weights"))
def barf_forward_fm(points_fm, frame_idx, poses, params, *,
                    first_layer_on_mxu=None, buffered_weights=True):
    """Feature-major entry point: points_fm [3, N] -> out_fm [4, N]
    (rows 0..2 = rgb, row 3 = density).  Use this from feature-major
    pipelines to avoid wrapper-side transpose passes over HBM."""
    w0b = _fold_pose(params, poses[frame_idx])
    return barf_pallas(points_fm, w0b, params["wmid"], params["bmid"],
                       params["wlast"], params["blast"],
                       first_layer_on_mxu=first_layer_on_mxu,
                       buffered_weights=buffered_weights)


@functools.partial(jax.jit,
                   static_argnames=("first_layer_on_mxu", "buffered_weights"))
def barf_forward(points, frame_idx, poses, params, *,
                 first_layer_on_mxu=None, buffered_weights=True):
    """Module-interface entry point: points [N, 3] -> (rgb [N, 3], density [N]).
    The points.T / out.T relayouts here are standalone HBM passes; prefer
    barf_forward_fm when the surrounding pipeline can stay feature-major."""
    out_fm = barf_forward_fm(points.T, frame_idx, poses, params,
                             first_layer_on_mxu=first_layer_on_mxu,
                             buffered_weights=buffered_weights)
    return out_fm[:3, :].T, out_fm[3, :]


# ---------------------------- pure-JAX reference ---------------------------
def barf_reference(points, frame_idx, poses, weights, biases):
    pose = poses[frame_idx]
    R = rotation_matrix(pose[:3])
    x = points @ R.T + pose[3:]
    for i, (W, b) in enumerate(zip(weights, biases)):
        x = x @ W.T + b
        if i < len(weights) - 1:
            x = jax.nn.relu(x)
    rgb = jax.nn.sigmoid(x[:, :3])
    density = jax.nn.relu(x[:, 3])
    return rgb, density


# --------------------------------- main ------------------------------------
def _build_demo_problem():
    key = jax.random.PRNGKey(0)
    keys = jax.random.split(key, 2 * NUM_LAYERS + 2)
    layer_dims = ([(HIDDEN_DIM, 3)]
                  + [(HIDDEN_DIM, HIDDEN_DIM)] * (NUM_LAYERS - 2)
                  + [(4, HIDDEN_DIM)])
    weights, biases = [], []
    for i, (out_d, in_d) in enumerate(layer_dims):
        scale = float(in_d) ** -0.5
        weights.append(jax.random.uniform(keys[2 * i], (out_d, in_d),
                                          minval=-scale, maxval=scale,
                                          dtype=jnp.float32))
        biases.append(jax.random.uniform(keys[2 * i + 1], (out_d,),
                                         minval=-scale, maxval=scale,
                                         dtype=jnp.float32))
    poses = jax.random.normal(keys[-2], (NUM_FRAMES, 6), dtype=jnp.float32)
    points = jax.random.normal(keys[-1], (N_POINTS, 3), dtype=jnp.float32)
    frame_idx = jnp.int32(3)
    return weights, biases, poses, points, frame_idx


def _run_checks(first_layer_on_mxu, buffered_weights):
    weights, biases, poses, points, frame_idx = _build_demo_problem()
    rgb_ref, dens_ref = barf_reference(points, frame_idx, poses, weights, biases)

    # f32 operand path: tight check against the pure-JAX reference.
    params_f32 = prepare_params(weights, biases, use_bf16=False)
    rgb, dens = barf_forward(points, frame_idx, poses, params_f32,
                             first_layer_on_mxu=first_layer_on_mxu,
                             buffered_weights=buffered_weights)
    rgb, dens = jax.block_until_ready((rgb, dens))
    assert rgb.shape == (N_POINTS, 3) and dens.shape == (N_POINTS,)
    assert jnp.allclose(rgb, rgb_ref, atol=1e-5, rtol=1e-5)
    assert jnp.allclose(dens, dens_ref, atol=1e-5, rtol=1e-5)

    # Feature-major end-to-end path (no wrapper-side transposes).
    out_fm = barf_forward_fm(points.T, frame_idx, poses, params_f32,
                             first_layer_on_mxu=first_layer_on_mxu,
                             buffered_weights=buffered_weights)
    out_fm = jax.block_until_ready(out_fm)
    assert out_fm.shape == (4, N_POINTS)
    assert jnp.allclose(out_fm[:3, :].T, rgb_ref, atol=1e-5, rtol=1e-5)
    assert jnp.allclose(out_fm[3, :], dens_ref, atol=1e-5, rtol=1e-5)

    # bf16 operand path (worthwhile on all generations incl. v5e): loose check.
    params_bf16 = prepare_params(weights, biases, use_bf16=True)
    rgb_b, dens_b = barf_forward(points, frame_idx, poses, params_bf16,
                                 first_layer_on_mxu=first_layer_on_mxu,
                                 buffered_weights=buffered_weights)
    rgb_b, dens_b = jax.block_until_ready((rgb_b, dens_b))
    assert jnp.allclose(rgb_b, rgb_ref, atol=5e-2, rtol=5e-2)
    assert jnp.allclose(dens_b, dens_ref, atol=5e-2, rtol=5e-2)


if __name__ == "__main__":
    gen = _tpu_generation()
    try:
        _run_checks(first_layer_on_mxu=_default_first_layer_on_mxu(gen),
                    buffered_weights=True)
    except Exception:
        # Conservative fallback (rank-1 VPU first layer, default pipelining)
        # in case the tuned configuration hits a lowering limitation on this
        # jax/libtpu combination.
        jax.clear_caches()
        _run_checks(first_layer_on_mxu=False, buffered_weights=False)
    print("KERNEL_OK")
</pallas_src>

<mosaic_0001>
module attributes {stable_mosaic.version = 11 : i64} {
  func.func @barf_mlp_kernel(%arg0: i32, %arg1: memref<3x128xf32, #tpu.memory_space<vmem>>, %arg2: memref<128x8xf32, #tpu.memory_space<vmem>>, %arg3: memref<2x128x128xf32, #tpu.memory_space<vmem>>, %arg4: memref<2x128x128xf32, #tpu.memory_space<vmem>>, %arg5: memref<4x128xf32, #tpu.memory_space<vmem>>, %arg6: memref<4x128xf32, #tpu.memory_space<vmem>>, %arg7: memref<4x128xf32, #tpu.memory_space<vmem>>) attributes {dimension_semantics = [#tpu.dimension_semantics<parallel>], iteration_bounds = array<i64: 2>, scalar_prefetch = 0 : i64, scratch_operands = 0 : i64, tpu.core_type = #tpu.core_type<tc>, window_params = [{transform_indices = @transform_0, window_bounds = array<i64: 3, 128>}, {pipeline_mode = #tpu.pipeline_mode<synchronous>, transform_indices = @transform_1, window_bounds = array<i64: 128, 8>}, {pipeline_mode = #tpu.pipeline_mode<synchronous>, transform_indices = @transform_2, window_bounds = array<i64: 2, 128, 128>}, {pipeline_mode = #tpu.pipeline_mode<synchronous>, transform_indices = @transform_3, window_bounds = array<i64: 2, 128, 128>}, {pipeline_mode = #tpu.pipeline_mode<synchronous>, transform_indices = @transform_4, window_bounds = array<i64: 4, 128>}, {pipeline_mode = #tpu.pipeline_mode<synchronous>, transform_indices = @transform_5, window_bounds = array<i64: 4, 128>}, {transform_indices = @transform_6, window_bounds = array<i64: 4, 128>}]} {
    %c0 = arith.constant 0 : index
    %c0_0 = arith.constant 0 : index
    %0 = vector.load %arg1[%c0, %c0_0] : memref<3x128xf32, #tpu.memory_space<vmem>>, vector<3x128xf32>
    %c0_1 = arith.constant 0 : index
    %c0_2 = arith.constant 0 : index
    %1 = vector.load %arg2[%c0_1, %c0_2] : memref<128x8xf32, #tpu.memory_space<vmem>>, vector<128x8xf32>
    %cst = arith.constant 1.000000e+00 : f32
    %2 = vector.broadcast %cst : f32 to vector<1x128xf32>
    %cst_3 = arith.constant 0.000000e+00 : f32
    %3 = vector.broadcast %cst_3 : f32 to vector<4x128xf32>
    %4 = tpu.concatenate %0, %2, %3 in 0 : vector<3x128xf32>, vector<1x128xf32>, vector<4x128xf32> -> vector<8x128xf32>
    %cst_4 = arith.constant dense<0.000000e+00> : vector<128x128xf32>
    %5 = tpu.matmul %1, %4, %cst_4 {dimension_numbers = #tpu.dot_dimension_numbers<[1], [0], [0], [1], [0, 0, 1, 1], [], []>} : vector<128x8xf32>, vector<8x128xf32>, vector<128x128xf32> -> vector<128x128xf32>
    %cst_5 = arith.constant 0.000000e+00 : f32
    %6 = vector.broadcast %cst_5 : f32 to vector<128x128xf32>
    %7 = arith.maximumf %5, %6 : vector<128x128xf32>
    %c0_6 = arith.constant 0 : index
    %c0_7 = arith.constant 0 : index
    %c0_8 = arith.constant 0 : index
    %8 = vector.load %arg3[%c0_6, %c0_7, %c0_8] : memref<2x128x128xf32, #tpu.memory_space<vmem>>, vector<1x128x128xf32>
    %9 = vector.shape_cast %8 : vector<1x128x128xf32> to vector<128x128xf32>
    %cst_9 = arith.constant dense<0.000000e+00> : vector<128x128xf32>
    %10 = tpu.matmul %9, %7, %cst_9 {dimension_numbers = #tpu.dot_dimension_numbers<[1], [0], [0], [1], [0, 0, 1, 1], [], []>} : vector<128x128xf32>, vector<128x128xf32>, vector<128x128xf32> -> vector<128x128xf32>
    %c0_10 = arith.constant 0 : index
    %c0_11 = arith.constant 0 : index
    %c0_12 = arith.constant 0 : index
    %11 = vector.load %arg4[%c0_10, %c0_11, %c0_12] : memref<2x128x128xf32, #tpu.memory_space<vmem>>, vector<1x128x128xf32>
    %12 = vector.shape_cast %11 : vector<1x128x128xf32> to vector<128x128xf32>
    %13 = arith.addf %10, %12 : vector<128x128xf32>
    %cst_13 = arith.constant 0.000000e+00 : f32
    %14 = vector.broadcast %cst_13 : f32 to vector<128x128xf32>
    %15 = arith.maximumf %13, %14 : vector<128x128xf32>
    %c1 = arith.constant 1 : index
    %c0_14 = arith.constant 0 : index
    %c0_15 = arith.constant 0 : index
    %16 = vector.load %arg3[%c1, %c0_14, %c0_15] : memref<2x128x128xf32, #tpu.memory_space<vmem>>, vector<1x128x128xf32>
    %17 = vector.shape_cast %16 : vector<1x128x128xf32> to vector<128x128xf32>
    %cst_16 = arith.constant dense<0.000000e+00> : vector<128x128xf32>
    %18 = tpu.matmul %17, %15, %cst_16 {dimension_numbers = #tpu.dot_dimension_numbers<[1], [0], [0], [1], [0, 0, 1, 1], [], []>} : vector<128x128xf32>, vector<128x128xf32>, vector<128x128xf32> -> vector<128x128xf32>
    %c1_17 = arith.constant 1 : index
    %c0_18 = arith.constant 0 : index
    %c0_19 = arith.constant 0 : index
    %19 = vector.load %arg4[%c1_17, %c0_18, %c0_19] : memref<2x128x128xf32, #tpu.memory_space<vmem>>, vector<1x128x128xf32>
    %20 = vector.shape_cast %19 : vector<1x128x128xf32> to vector<128x128xf32>
    %21 = arith.addf %18, %20 : vector<128x128xf32>
    %cst_20 = arith.constant 0.000000e+00 : f32
    %22 = vector.broadcast %cst_20 : f32 to vector<128x128xf32>
    %23 = arith.maximumf %21, %22 : vector<128x128xf32>
    %c0_21 = arith.constant 0 : index
    %c0_22 = arith.constant 0 : index
    %24 = vector.load %arg5[%c0_21, %c0_22] : memref<4x128xf32, #tpu.memory_space<vmem>>, vector<4x128xf32>
    %cst_23 = arith.constant dense<0.000000e+00> : vector<4x128xf32>
    %25 = tpu.matmul %24, %23, %cst_23 {dimension_numbers = #tpu.dot_dimension_numbers<[1], [0], [0], [1], [0, 0, 1, 1], [], []>} : vector<4x128xf32>, vector<128x128xf32>, vector<4x128xf32> -> vector<4x128xf32>
    %c0_24 = arith.constant 0 : index
    %c0_25 = arith.constant 0 : index
    %26 = vector.load %arg6[%c0_24, %c0_25] : memref<4x128xf32, #tpu.memory_space<vmem>>, vector<4x128xf32>
    %27 = arith.addf %25, %26 : vector<4x128xf32>
    %28 = tpu.iota {dimensions = array<i32: 0>} : vector<4x128xi32>
    %c3_i32 = arith.constant 3 : i32
    %29 = vector.broadcast %c3_i32 : i32 to vector<4x128xi32>
    %30 = arith.cmpi slt, %28, %29 : vector<4x128xi32>
    %31 = arith.negf %27 : vector<4x128xf32>
    %32 = math.exp %31 : vector<4x128xf32>
    %cst_26 = arith.constant 1.000000e+00 : f32
    %33 = vector.broadcast %cst_26 : f32 to vector<4x128xf32>
    %34 = arith.addf %33, %32 : vector<4x128xf32>
    %35 = arith.divf %33, %34 : vector<4x128xf32>
    %cst_27 = arith.constant 0.000000e+00 : f32
    %36 = vector.broadcast %cst_27 : f32 to vector<4x128xf32>
    %37 = arith.maximumf %27, %36 : vector<4x128xf32>
    %38 = arith.select %30, %35, %37 : vector<4x128xi1>, vector<4x128xf32>
    %c0_28 = arith.constant 0 : index
    %c0_29 = arith.constant 0 : index
    %39 = vector.load %arg7[%c0_28, %c0_29] : memref<4x128xf32, #tpu.memory_space<vmem>>, vector<4x128xf32>
    tpu.vector_store %arg7[%c0_28, %c0_29], %38 {strides = array<i32>} : memref<4x128xf32, #tpu.memory_space<vmem>>, vector<4x128xf32>,
    return
  }
  func.func @transform_0(%arg0: i32) -> (i32, i32) {
    %c0_i32 = arith.constant 0 : i32
    %c0_i32_0 = arith.constant 0 : i32
    return %c0_i32, %arg0 : i32, i32
  }
  func.func @transform_1(%arg0: i32) -> (i32, i32) {
    %c0_i32 = arith.constant 0 : i32
    %c0_i32_0 = arith.constant 0 : i32
    %c0_i32_1 = arith.constant 0 : i32
    return %c0_i32, %c0_i32_0 : i32, i32
  }
  func.func @transform_2(%arg0: i32) -> (i32, i32, i32) {
    %c0_i32 = arith.constant 0 : i32
    %c0_i32_0 = arith.constant 0 : i32
    %c0_i32_1 = arith.constant 0 : i32
    %c0_i32_2 = arith.constant 0 : i32
    return %c0_i32, %c0_i32_0, %c0_i32_1 : i32, i32, i32
  }
  func.func @transform_3(%arg0: i32) -> (i32, i32, i32) {
    %c0_i32 = arith.constant 0 : i32
    %c0_i32_0 = arith.constant 0 : i32
    %c0_i32_1 = arith.constant 0 : i32
    %c0_i32_2 = arith.constant 0 : i32
    return %c0_i32, %c0_i32_0, %c0_i32_1 : i32, i32, i32
  }
  func.func @transform_4(%arg0: i32) -> (i32, i32) {
    %c0_i32 = arith.constant 0 : i32
    %c0_i32_0 = arith.constant 0 : i32
    %c0_i32_1 = arith.constant 0 : i32
    return %c0_i32, %c0_i32_0 : i32, i32
  }
  func.func @transform_5(%arg0: i32) -> (i32, i32) {
    %c0_i32 = arith.constant 0 : i32
    %c0_i32_0 = arith.constant 0 : i32
    %c0_i32_1 = arith.constant 0 : i32
    return %c0_i32, %c0_i32_0 : i32, i32
  }
  func.func @transform_6(%arg0: i32) -> (i32, i32) {
    %c0_i32 = arith.constant 0 : i32
    %c0_i32_0 = arith.constant 0 : i32
    return %c0_i32, %arg0 : i32, i32
  }
}

module attributes {stable_mosaic.version = 11 : i64} {
  func.func @barf_mlp_kernel(%arg0: i32, %arg1: memref<3x128xf32, #tpu.memory_space<vmem>>, %arg2: memref<128x8xf32, #tpu.memory_space<vmem>>, %arg3: memref<2x128x128xf32, #tpu.memory_space<vmem>>, %arg4: memref<2x128x128xf32, #tpu.memory_space<vmem>>, %arg5: memref<4x128xf32, #tpu.memory_space<vmem>>, %arg6: memref<4x128xf32, #tpu.memory_space<vmem>>, %arg7: memref<4x128xf32, #tpu.memory_space<vmem>>) attributes {dimension_semantics = [#tpu.dimension_semantics<parallel>], iteration_bounds = array<i64: 2>, scalar_prefetch = 0 : i64, scratch_operands = 0 : i64, tpu.core_type = #tpu.core_type<tc>, window_params = [{transform_indices = @transform_0, window_bounds = array<i64: 3, 128>}, {pipeline_mode = #tpu.pipeline_mode<synchronous>, transform_indices = @transform_1, window_bounds = array<i64: 128, 8>}, {pipeline_mode = #tpu.pipeline_mode<synchronous>, transform_indices = @transform_2, window_bounds = array<i64: 2, 128, 128>}, {pipeline_mode = #tpu.pipeline_mode<synchronous>, transform_indices = @transform_3, window_bounds = array<i64: 2, 128, 128>}, {pipeline_mode = #tpu.pipeline_mode<synchronous>, transform_indices = @transform_4, window_bounds = array<i64: 4, 128>}, {pipeline_mode = #tpu.pipeline_mode<synchronous>, transform_indices = @transform_5, window_bounds = array<i64: 4, 128>}, {transform_indices = @transform_6, window_bounds = array<i64: 4, 128>}]} {
    %c0 = arith.constant 0 : index
    %c0_0 = arith.constant 0 : index
    %0 = vector.load %arg1[%c0, %c0_0] : memref<3x128xf32, #tpu.memory_space<vmem>>, vector<3x128xf32>
    %c0_1 = arith.constant 0 : index
    %c0_2 = arith.constant 0 : index
    %1 = vector.load %arg2[%c0_1, %c0_2] : memref<128x8xf32, #tpu.memory_space<vmem>>, vector<128x8xf32>
    %2 = vector.extract_strided_slice %1 {offsets = [0, 0], sizes = [128, 1], strides = [1, 1]} : vector<128x8xf32> to vector<128x1xf32>
    %3 = vector.extract_strided_slice %0 {offsets = [0, 0], sizes = [1, 128], strides = [1, 1]} : vector<3x128xf32> to vector<1x128xf32>
    %4 = vector.broadcast %2 : vector<128x1xf32> to vector<128x128xf32>
    %5 = vector.broadcast %3 : vector<1x128xf32> to vector<128x128xf32>
    %6 = arith.mulf %4, %5 : vector<128x128xf32>
    %7 = vector.extract_strided_slice %1 {offsets = [0, 1], sizes = [128, 1], strides = [1, 1]} : vector<128x8xf32> to vector<128x1xf32>
    %8 = vector.extract_strided_slice %0 {offsets = [1, 0], sizes = [1, 128], strides = [1, 1]} : vector<3x128xf32> to vector<1x128xf32>
    %9 = vector.broadcast %7 : vector<128x1xf32> to vector<128x128xf32>
    %10 = vector.broadcast %8 : vector<1x128xf32> to vector<128x128xf32>
    %11 = arith.mulf %9, %10 : vector<128x128xf32>
    %12 = arith.addf %6, %11 : vector<128x128xf32>
    %13 = vector.extract_strided_slice %1 {offsets = [0, 2], sizes = [128, 1], strides = [1, 1]} : vector<128x8xf32> to vector<128x1xf32>
    %14 = vector.extract_strided_slice %0 {offsets = [2, 0], sizes = [1, 128], strides = [1, 1]} : vector<3x128xf32> to vector<1x128xf32>
    %15 = vector.broadcast %13 : vector<128x1xf32> to vector<128x128xf32>
    %16 = vector.broadcast %14 : vector<1x128xf32> to vector<128x128xf32>
    %17 = arith.mulf %15, %16 : vector<128x128xf32>
    %18 = arith.addf %12, %17 : vector<128x128xf32>
    %19 = vector.extract_strided_slice %1 {offsets = [0, 3], sizes = [128, 1], strides = [1, 1]} : vector<128x8xf32> to vector<128x1xf32>
    %20 = vector.broadcast %19 : vector<128x1xf32> to vector<128x128xf32>
    %21 = arith.addf %18, %20 : vector<128x128xf32>
    %cst = arith.constant 0.000000e+00 : f32
    %22 = vector.broadcast %cst : f32 to vector<128x128xf32>
    %23 = arith.maximumf %21, %22 : vector<128x128xf32>
    %c0_3 = arith.constant 0 : index
    %c0_4 = arith.constant 0 : index
    %c0_5 = arith.constant 0 : index
    %24 = vector.load %arg3[%c0_3, %c0_4, %c0_5] : memref<2x128x128xf32, #tpu.memory_space<vmem>>, vector<1x128x128xf32>
    %25 = vector.shape_cast %24 : vector<1x128x128xf32> to vector<128x128xf32>
    %cst_6 = arith.constant dense<0.000000e+00> : vector<128x128xf32>
    %26 = tpu.matmul %25, %23, %cst_6 {dimension_numbers = #tpu.dot_dimension_numbers<[1], [0], [0], [1], [0, 0, 1, 1], [], []>} : vector<128x128xf32>, vector<128x128xf32>, vector<128x128xf32> -> vector<128x128xf32>
    %c0_7 = arith.constant 0 : index
    %c0_8 = arith.constant 0 : index
    %c0_9 = arith.constant 0 : index
    %27 = vector.load %arg4[%c0_7, %c0_8, %c0_9] : memref<2x128x128xf32, #tpu.memory_space<vmem>>, vector<1x128x128xf32>
    %28 = vector.shape_cast %27 : vector<1x128x128xf32> to vector<128x128xf32>
    %29 = arith.addf %26, %28 : vector<128x128xf32>
    %cst_10 = arith.constant 0.000000e+00 : f32
    %30 = vector.broadcast %cst_10 : f32 to vector<128x128xf32>
    %31 = arith.maximumf %29, %30 : vector<128x128xf32>
    %c1 = arith.constant 1 : index
    %c0_11 = arith.constant 0 : index
    %c0_12 = arith.constant 0 : index
    %32 = vector.load %arg3[%c1, %c0_11, %c0_12] : memref<2x128x128xf32, #tpu.memory_space<vmem>>, vector<1x128x128xf32>
    %33 = vector.shape_cast %32 : vector<1x128x128xf32> to vector<128x128xf32>
    %cst_13 = arith.constant dense<0.000000e+00> : vector<128x128xf32>
    %34 = tpu.matmul %33, %31, %cst_13 {dimension_numbers = #tpu.dot_dimension_numbers<[1], [0], [0], [1], [0, 0, 1, 1], [], []>} : vector<128x128xf32>, vector<128x128xf32>, vector<128x128xf32> -> vector<128x128xf32>
    %c1_14 = arith.constant 1 : index
    %c0_15 = arith.constant 0 : index
    %c0_16 = arith.constant 0 : index
    %35 = vector.load %arg4[%c1_14, %c0_15, %c0_16] : memref<2x128x128xf32, #tpu.memory_space<vmem>>, vector<1x128x128xf32>
    %36 = vector.shape_cast %35 : vector<1x128x128xf32> to vector<128x128xf32>
    %37 = arith.addf %34, %36 : vector<128x128xf32>
    %cst_17 = arith.constant 0.000000e+00 : f32
    %38 = vector.broadcast %cst_17 : f32 to vector<128x128xf32>
    %39 = arith.maximumf %37, %38 : vector<128x128xf32>
    %c0_18 = arith.constant 0 : index
    %c0_19 = arith.constant 0 : index
    %40 = vector.load %arg5[%c0_18, %c0_19] : memref<4x128xf32, #tpu.memory_space<vmem>>, vector<4x128xf32>
    %cst_20 = arith.constant dense<0.000000e+00> : vector<4x128xf32>
    %41 = tpu.matmul %40, %39, %cst_20 {dimension_numbers = #tpu.dot_dimension_numbers<[1], [0], [0], [1], [0, 0, 1, 1], [], []>} : vector<4x128xf32>, vector<128x128xf32>, vector<4x128xf32> -> vector<4x128xf32>
    %c0_21 = arith.constant 0 : index
    %c0_22 = arith.constant 0 : index
    %42 = vector.load %arg6[%c0_21, %c0_22] : memref<4x128xf32, #tpu.memory_space<vmem>>, vector<4x128xf32>
    %43 = arith.addf %41, %42 : vector<4x128xf32>
    %44 = tpu.iota {dimensions = array<i32: 0>} : vector<4x128xi32>
    %c3_i32 = arith.constant 3 : i32
    %45 = vector.broadcast %c3_i32 : i32 to vector<4x128xi32>
    %46 = arith.cmpi slt, %44, %45 : vector<4x128xi32>
    %47 = arith.negf %43 : vector<4x128xf32>
    %48 = math.exp %47 : vector<4x128xf32>
    %cst_23 = arith.constant 1.000000e+00 : f32
    %49 = vector.broadcast %cst_23 : f32 to vector<4x128xf32>
    %50 = arith.addf %49, %48 : vector<4x128xf32>
    %51 = arith.divf %49, %50 : vector<4x128xf32>
    %cst_24 = arith.constant 0.000000e+00 : f32
    %52 = vector.broadcast %cst_24 : f32 to vector<4x128xf32>
    %53 = arith.maximumf %43, %52 : vector<4x128xf32>
    %54 = arith.select %46, %51, %53 : vector<4x128xi1>, vector<4x128xf32>
    %c0_25 = arith.constant 0 : index
    %c0_26 = arith.constant 0 : index
    %55 = vector.load %arg7[%c0_25, %c0_26] : memref<4x128xf32, #tpu.memory_space<vmem>>, vector<4x128xf32>
    tpu.vector_store %arg7[%c0_25, %c0_26], %54 {strides = array<i32>} : memref<4x128xf32, #tpu.memory_space<vmem>>, vector<4x128xf32>,
    return
  }
  func.func @transform_0(%arg0: i32) -> (i32, i32) {
    %c0_i32 = arith.constant 0 : i32
    %c0_i32_0 = arith.constant 0 : i32
    return %c0_i32, %arg0 : i32, i32
  }
  func.func @transform_1(%arg0: i32) -> (i32, i32) {
    %c0_i32 = arith.constant 0 : i32
    %c0_i32_0 = arith.constant 0 : i32
    %c0_i32_1 = arith.constant 0 : i32
    return %c0_i32, %c0_i32_0 : i32, i32
  }
  func.func @transform_2(%arg0: i32) -> (i32, i32, i32) {
    %c0_i32 = arith.constant 0 : i32
    %c0_i32_0 = arith.constant 0 : i32
    %c0_i32_1 = arith.constant 0 : i32
    %c0_i32_2 = arith.constant 0 : i32
    return %c0_i32, %c0_i32_0, %c0_i32_1 : i32, i32, i32
  }
  func.func @transform_3(%arg0: i32) -> (i32, i32, i32) {
    %c0_i32 = arith.constant 0 : i32
    %c0_i32_0 = arith.constant 0 : i32
    %c0_i32_1 = arith.constant 0 : i32
    %c0_i32_2 = arith.constant 0 : i32
    return %c0_i32, %c0_i32_0, %c0_i32_1 : i32, i32, i32
  }
  func.func @transform_4(%arg0: i32) -> (i32, i32) {
    %c0_i32 = arith.constant 0 : i32
    %c0_i32_0 = arith.constant 0 : i32
    %c0_i32_1 = arith.constant 0 : i32
    return %c0_i32, %c0_i32_0 : i32, i32
  }
  func.func @transform_5(%arg0: i32) -> (i32, i32) {
    %c0_i32 = arith.constant 0 : i32
    %c0_i32_0 = arith.constant 0 : i32
    %c0_i32_1 = arith.constant 0 : i32
    return %c0_i32, %c0_i32_0 : i32, i32
  }
  func.func @transform_6(%arg0: i32) -> (i32, i32) {
    %c0_i32 = arith.constant 0 : i32
    %c0_i32_0 = arith.constant 0 : i32
    return %c0_i32, %arg0 : i32, i32
  }
}

</mosaic_0001>

<llo_original>
// kernel: barf_forward_fm.1
$region0: #{barf_forward_fm.1}
  #allocation0 [shape = 'u32[]', space=smem, size = 0x4, offset = 0x4, fixed_abs, tag = 'smem constant byte address 0x4 - core index']
  #allocation1 [shape = 'u32[144,128]{1,0:T(1,128)}', space=vmem, size = 0x12000, scoped, tag = 'internal scratch']
  %s0 = inlined_call_operand.hbm [shape: f32[3,256], index: 0, kind: input, shape index: {}]
  %s1 = inlined_call_operand.vmem [shape: f32[128,8], index: 1, kind: input, shape index: {}]
  %s2 = inlined_call_operand.vmem [shape: f32[2,128,128], index: 2, kind: input, shape index: {}]
  %s3 = inlined_call_operand.hbm [shape: f32[2,128,128], index: 3, kind: input, shape index: {}]
  %s4 = inlined_call_operand.hbm [shape: f32[4,128], index: 4, kind: input, shape index: {}]
  %s5 = inlined_call_operand.hbm [shape: f32[4,128], index: 5, kind: input, shape index: {}]
  %s6 = inlined_call_operand.hbm [shape: f32[4,256], index: 6, kind: output, shape index: {}]
  %s7 = sld [smem:[#allocation0]]
  $region73: #{barf_forward_fm.1} parent=0
    _
  %s9 = ssub.s32 1, %s7
  %s10 = scalar_select 0, %s9, %s7
  $region1: #{barf_forward_fm.1} parent=0
    #allocation2 [shape = 'u8[4096]{0}', space=vmem, size = 0x1000, scoped, tag = 'input window, operand 0']
    #allocation3 [shape = 's32[2]{0}', space=sflag, size = 0x8, scoped, tag = 'scoped memory for barf_forward_fm.1']
    #allocation4 [shape = 's32[2]{0}', space=sflag, size = 0x8, scoped, tag = 'scoped memory for barf_forward_fm.1']
    #allocation5 [shape = 'u8[131072]{0}', space=vmem, size = 0x20000, scoped, tag = 'input window, operand 3, single buffered']
    #allocation6 [shape = 's32[1]{0}', space=sflag, size = 0x4, scoped, tag = 'scoped memory for barf_forward_fm.1']
    #allocation7 [shape = 'u8[2048]{0}', space=vmem, size = 0x800, scoped, tag = 'input window, operand 4, single buffered']
    #allocation8 [shape = 'u8[2048]{0}', space=vmem, size = 0x800, scoped, tag = 'input window, operand 5, single buffered']
    #allocation9 [shape = 's32[1]{0}', space=sflag, size = 0x4, scoped, tag = 'scoped memory for barf_forward_fm.1']
    #allocation10 [shape = 'u8[4096]{0}', space=vmem, size = 0x1000, scoped, tag = 'output window, operand 0']
    %11 = vsyncpa [#allocation3], 0
    %s12 = scalar_lea.sflag [#allocation3], 1
    %13 = vsyncpa %s12, 0
    %14 = vsyncpa [#allocation6], 0
    %15 = vsyncpa [#allocation9], 0
    %16 = vsyncpa [#allocation4], 0
    %s17 = scalar_lea.sflag [#allocation4], 1
    %18 = vsyncpa %s17, 0
    loop: start=0, step=1, limit=4
    $region2: #{barf_forward_fm.1} parent=1 // loop_pre_header
      _
    $region3: #{barf_forward_fm.1} parent=1 // loop_header
      %s20 = sphi 0, %s24
      %p21 = scmp.ge.s32.totalorder %s20, 4
      %s30 = sphi 0, %s32
      %s33 = sphi 0, %s30
      %s34 = sphi 0, %s33
      %s50 = sphi 0, %s34
      %s54 = sphi 0, %s54
      %s56 = sphi 0, %s54
      %s57 = sphi 0, %s56
      %s71 = sphi 0, %s57
      %s75 = sphi 0, %s75
      %s77 = sphi 0, %s75
      %s78 = sphi 0, %s77
      %s92 = sphi 0, %s78
      %s96 = sphi 0, %s96
      %s98 = sphi 0, %s96
      %s99 = sphi 0, %s98
      %s113 = sphi 0, %s99
      %s117 = sphi 0, %s117
      %s119 = sphi 0, %s117
      %s120 = sphi 0, %s119
      %s134 = sphi 0, %s120
      %s138 = sphi 0, %s138
      %s140 = sphi 0, %s138
      %s141 = sphi 0, %s140
      %s155 = sphi 0, %s141
      %s161 = sphi 0, %s163
      %s164 = sphi 0, %s161
      %s165 = sphi 0, %s164
      %s181 = sphi 0, %s165
    $region4: #{barf_forward_fm.1} parent=1 // loop_header_branch
      %23 = sbr.rel (%p21) target = $region8
    $region5: #{barf_forward_fm.1} parent=1 // loop_body
      %s25 = ssub.s32 %s20, 1
      %s26 = ssub.s32 %s20, 2
      %s27 = sadd.s32 %s20, 1
      %s28 = ssub.s32 %s20, %s27
      %p29 = scmp.eq.s32.totalorder %s28, 0
      %s31 = sadd.s32 %s30, 1
      %s32 = scalar_select %p29, %s30, %s31
      %p35 = pneg %p29
      %p36 = scmp.eq.s32.totalorder %s20, 1
      %p37 = por %p35, %p36
      %p38 = scmp.ne.s32.totalorder %s30, %s33
      %p39 = scmp.eq.s32.totalorder %s20, 0
      %p40 = por %p38, %p39
      %p41 = scmp.ne.s32.totalorder %s30, %s33
      %p42 = scmp.eq.s32.totalorder %s25, 1
      %p43 = por %p41, %p42
      %p44 = scmp.ne.s32.totalorder %s33, %s34
      %p45 = scmp.eq.s32.totalorder %s25, 0
      %p46 = por %p44, %p45
      %p47 = scmp.ne.s32.totalorder %s33, %s34
      %p48 = scmp.eq.s32.totalorder %s26, 1
      %p49 = por %p47, %p48
      %p51 = scmp.ne.s32.totalorder %s34, %s50
      %p52 = scmp.eq.s32.totalorder %s26, 0
      %p53 = por %p51, %p52
      %s55 = sadd.s32 %s54, 1
      %p58 = scmp.eq.s32.totalorder %s20, 1
      %p59 = scmp.ne.s32.totalorder %s54, %s56
      %p60 = scmp.eq.s32.totalorder %s20, 0
      %p61 = por %p59, %p60
      %p62 = scmp.ne.s32.totalorder %s54, %s56
      %p63 = scmp.eq.s32.totalorder %s25, 1
      %p64 = por %p62, %p63
      %p65 = scmp.ne.s32.totalorder %s56, %s57
      %p66 = scmp.eq.s32.totalorder %s25, 0
      %p67 = por %p65, %p66
      %p68 = scmp.ne.s32.totalorder %s56, %s57
      %p69 = scmp.eq.s32.totalorder %s26, 1
      %p70 = por %p68, %p69
      %p72 = scmp.ne.s32.totalorder %s57, %s71
      %p73 = scmp.eq.s32.totalorder %s26, 0
      %p74 = por %p72, %p73
      %s76 = sadd.s32 %s75, 1
      %p79 = scmp.eq.s32.totalorder %s20, 1
      %p80 = scmp.ne.s32.totalorder %s75, %s77
      %p81 = scmp.eq.s32.totalorder %s20, 0
      %p82 = por %p80, %p81
      %p83 = scmp.ne.s32.totalorder %s75, %s77
      %p84 = scmp.eq.s32.totalorder %s25, 1
      %p85 = por %p83, %p84
      %p86 = scmp.ne.s32.totalorder %s77, %s78
      %p87 = scmp.eq.s32.totalorder %s25, 0
      %p88 = por %p86, %p87
      %p89 = scmp.ne.s32.totalorder %s77, %s78
      %p90 = scmp.eq.s32.totalorder %s26, 1
      %p91 = por %p89, %p90
      %p93 = scmp.ne.s32.totalorder %s78, %s92
      %p94 = scmp.eq.s32.totalorder %s26, 0
      %p95 = por %p93, %p94
      %s97 = sadd.s32 %s96, 1
      %p100 = scmp.eq.s32.totalorder %s20, 1
      %p101 = scmp.ne.s32.totalorder %s96, %s98
      %p102 = scmp.eq.s32.totalorder %s20, 0
      %p103 = por %p101, %p102
      %p104 = scmp.ne.s32.totalorder %s96, %s98
      %p105 = scmp.eq.s32.totalorder %s25, 1
      %p106 = por %p104, %p105
      %p107 = scmp.ne.s32.totalorder %s98, %s99
      %p108 = scmp.eq.s32.totalorder %s25, 0
      %p109 = por %p107, %p108
      %p110 = scmp.ne.s32.totalorder %s98, %s99
      %p111 = scmp.eq.s32.totalorder %s26, 1
      %p112 = por %p110, %p111
      %p114 = scmp.ne.s32.totalorder %s99, %s113
      %p115 = scmp.eq.s32.totalorder %s26, 0
      %p116 = por %p114, %p115
      %s118 = sadd.s32 %s117, 1
      %p121 = scmp.eq.s32.totalorder %s20, 1
      %p122 = scmp.ne.s32.totalorder %s117, %s119
      %p123 = scmp.eq.s32.totalorder %s20, 0
      %p124 = por %p122, %p123
      %p125 = scmp.ne.s32.totalorder %s117, %s119
      %p126 = scmp.eq.s32.totalorder %s25, 1
      %p127 = por %p125, %p126
      %p128 = scmp.ne.s32.totalorder %s119, %s120
      %p129 = scmp.eq.s32.totalorder %s25, 0
      %p130 = por %p128, %p129
      %p131 = scmp.ne.s32.totalorder %s119, %s120
      %p132 = scmp.eq.s32.totalorder %s26, 1
      %p133 = por %p131, %p132
      %p135 = scmp.ne.s32.totalorder %s120, %s134
      %p136 = scmp.eq.s32.totalorder %s26, 0
      %p137 = por %p135, %p136
      %s139 = sadd.s32 %s138, 1
      %p142 = scmp.eq.s32.totalorder %s20, 1
      %p143 = scmp.ne.s32.totalorder %s138, %s140
      %p144 = scmp.eq.s32.totalorder %s20, 0
      %p145 = por %p143, %p144
      %p146 = scmp.ne.s32.totalorder %s138, %s140
      %p147 = scmp.eq.s32.totalorder %s25, 1
      %p148 = por %p146, %p147
      %p149 = scmp.ne.s32.totalorder %s140, %s141
      %p150 = scmp.eq.s32.totalorder %s25, 0
      %p151 = por %p149, %p150
      %p152 = scmp.ne.s32.totalorder %s140, %s141
      %p153 = scmp.eq.s32.totalorder %s26, 1
      %p154 = por %p152, %p153
      %p156 = scmp.ne.s32.totalorder %s141, %s155
      %p157 = scmp.eq.s32.totalorder %s26, 0
      %p158 = por %p156, %p157
      %s159 = ssub.s32 %s20, %s27
      %p160 = scmp.eq.s32.totalorder %s159, 0
      %s162 = sadd.s32 %s161, 1
      %s163 = scalar_select %p160, %s161, %s162
      %p166 = pneg %p160
      %p167 = scmp.eq.s32.totalorder %s20, 1
      %p168 = por %p166, %p167
      %p169 = scmp.ne.s32.totalorder %s161, %s164
      %p170 = scmp.eq.s32.totalorder %s20, 0
      %p171 = por %p169, %p170
      %p172 = scmp.ne.s32.totalorder %s161, %s164
      %p173 = scmp.eq.s32.totalorder %s25, 1
      %p174 = por %p172, %p173
      %p175 = scmp.ne.s32.totalorder %s164, %s165
      %p176 = scmp.eq.s32.totalorder %s25, 0
      %p177 = por %p175, %p176
      %p178 = scmp.ne.s32.totalorder %s164, %s165
      %p179 = scmp.eq.s32.totalorder %s26, 1
      %p180 = por %p178, %p179
      %p182 = scmp.ne.s32.totalorder %s165, %s181
      %p183 = scmp.eq.s32.totalorder %s26, 0
      %p184 = por %p182, %p183
      %p185 = scmp.le.s32.totalorder 1, %s20
      %p186 = scmp.lt.s32.totalorder %s20, 3
      %p187 = pnand %p185, %p186
      %p188 = pneg %p187
      // Predicated region
      $region9: #{barf_forward_fm.1} parent=5 // pred_check
        _
      $region10: #{barf_forward_fm.1} parent=5 // pred_check_branch
        %190 = sbr.rel (%p187) target = $region12
      $region11: #{barf_forward_fm.1} parent=5 // pred_region
        %s191 = ssub.s32 %s20, 1
        // Predicated region
        $region13: #{barf_forward_fm.1} parent=11 // pred_check
          %p192 = pneg %p67
        $region14: #{barf_forward_fm.1} parent=11 // pred_check_branch
          %194 = sbr.rel (%p192) target = $region16
        $region15: #{barf_forward_fm.1} parent=11 // pred_region
          _
        $region16: #{barf_forward_fm.1} parent=11 // pred_fallthru
          _
        // Predicated region
        $region17: #{barf_forward_fm.1} parent=11 // pred_check
          %p195 = pneg %p88
        $region18: #{barf_forward_fm.1} parent=11 // pred_check_branch
          %197 = sbr.rel (%p195) target = $region20
        $region19: #{barf_forward_fm.1} parent=11 // pred_region
          _
        $region20: #{barf_forward_fm.1} parent=11 // pred_fallthru
          _
        // Predicated region
        $region21: #{barf_forward_fm.1} parent=11 // pred_check
          %p198 = pneg %p109
        $region22: #{barf_forward_fm.1} parent=11 // pred_check_branch
          %200 = sbr.rel (%p198) target = $region24
        $region23: #{barf_forward_fm.1} parent=11 // pred_region
          %s202 = ssub.s32 4096, 4096
          %203 = vsyncadd [#allocation6], %s202
          %s204 = sshll.u32 [#allocation5], 4
          %s205 = int_to_ptr.vmem [resolvable:$true] %s204
          %210 = dma.hbm_to_vmem [thread:$0]  %s3, 4096, %s205, [#allocation6], 128, 128, 8
        $region24: #{barf_forward_fm.1} parent=11 // pred_fallthru
          _
        // Predicated region
        $region25: #{barf_forward_fm.1} parent=11 // pred_check
          %p211 = pneg %p130
        $region26: #{barf_forward_fm.1} parent=11 // pred_check_branch
          %213 = sbr.rel (%p211) target = $region28
        $region27: #{barf_forward_fm.1} parent=11 // pred_region
          %s215 = ssub.s32 64, 64
          %216 = vsyncadd [#allocation6], %s215
          %s218 = sshll.u32 [#allocation7], 4
          %s219 = int_to_ptr.vmem [resolvable:$true] %s218
          %221 = dma.hbm_to_vmem [thread:$0]  %s4, 64, %s219, [#allocation6]
        $region28: #{barf_forward_fm.1} parent=11 // pred_fallthru
          _
        // Predicated region
        $region29: #{barf_forward_fm.1} parent=11 // pred_check
          %p222 = pneg %p151
        $region30: #{barf_forward_fm.1} parent=11 // pred_check_branch
          %224 = sbr.rel (%p222) target = $region32
        $region31: #{barf_forward_fm.1} parent=11 // pred_region
          %s226 = ssub.s32 64, 64
          %227 = vsyncadd [#allocation9], %s226
          %s229 = sshll.u32 [#allocation8], 4
          %s230 = int_to_ptr.vmem [resolvable:$true] %s229
          %232 = dma.hbm_to_vmem [thread:$0]  %s5, 64, %s230, [#allocation9]
        $region32: #{barf_forward_fm.1} parent=11 // pred_fallthru
          _
      $region12: #{barf_forward_fm.1} parent=5 // pred_fallthru
        _
      %p233 = scmp.lt.s32.totalorder %s20, 2
      // Predicated region
      $region33: #{barf_forward_fm.1} parent=5 // pred_check
        %p234 = pneg %p233
      $region34: #{barf_forward_fm.1} parent=5 // pred_check_branch
        %236 = sbr.rel (%p234) target = $region36
      $region35: #{barf_forward_fm.1} parent=5 // pred_region
        // Predicated region
        $region37: #{barf_forward_fm.1} parent=35 // pred_check
          %p237 = pneg %p40
        $region38: #{barf_forward_fm.1} parent=35 // pred_check_branch
          %239 = sbr.rel (%p237) target = $region40
        $region39: #{barf_forward_fm.1} parent=35 // pred_region
          %s240 = sand.u32 %s30, 1
          %s241 = scalar_lea.sflag [#allocation3], %s240
          %s242 = sand.u32 %s30, 1
          %s243 = smul.addr %s242, 4
          %s244 = scalar_lea.vmem [#allocation2], %s243
          %s246 = ssub.s32 64, 64
          %247 = vsyncadd %s241, %s246
          %s248 = smul.addr %s20, 64
          %s249 = scalar_lea.hbm %s0, %s248
          %s251 = sshll.u32 %s244, 4
          %s252 = int_to_ptr.vmem [resolvable:$true] %s251
          %254 = dma.hbm_to_vmem [thread:$0]  %s249, 64, %s252, %s241
        $region40: #{barf_forward_fm.1} parent=35 // pred_fallthru
          _
      $region36: #{barf_forward_fm.1} parent=5 // pred_fallthru
        _
      %p255 = scmp.le.s32.totalorder 1, %s20
      %p256 = scmp.lt.s32.totalorder %s20, 3
      %p257 = pnand %p255, %p256
      %p258 = pneg %p257
      // Predicated region
      $region41: #{barf_forward_fm.1} parent=5 // pred_check
        _
      $region42: #{barf_forward_fm.1} parent=5 // pred_check_branch
        %260 = sbr.rel (%p257) target = $region44
      $region43: #{barf_forward_fm.1} parent=5 // pred_region
        %s261 = ssub.s32 %s20, 1
        %s262 = sand.u32 %s33, 1
        %s263 = scalar_lea.sflag [#allocation3], %s262
        %s264 = sand.u32 %s33, 1
        %s265 = smul.addr %s264, 4
        %s266 = scalar_lea.vmem [#allocation2], %s265
        // Predicated region
        $region45: #{barf_forward_fm.1} parent=43 // pred_check
          %p267 = pneg %p46
        $region46: #{barf_forward_fm.1} parent=43 // pred_check_branch
          %269 = sbr.rel (%p267) target = $region48
        $region47: #{barf_forward_fm.1} parent=43 // pred_region
          %270 = dma.done %s263, 64
        $region48: #{barf_forward_fm.1} parent=43 // pred_fallthru
          _
        // Predicated region
        $region49: #{barf_forward_fm.1} parent=43 // pred_check
          %p271 = pneg %p109
        $region50: #{barf_forward_fm.1} parent=43 // pred_check_branch
          %273 = sbr.rel (%p271) target = $region52
        $region51: #{barf_forward_fm.1} parent=43 // pred_region
          %274 = dma.done [#allocation6], 4096
        $region52: #{barf_forward_fm.1} parent=43 // pred_fallthru
          _
        // Predicated region
        $region53: #{barf_forward_fm.1} parent=43 // pred_check
          %p275 = pneg %p130
        $region54: #{barf_forward_fm.1} parent=43 // pred_check_branch
          %277 = sbr.rel (%p275) target = $region56
        $region55: #{barf_forward_fm.1} parent=43 // pred_region
          %278 = dma.done [#allocation6], 64
        $region56: #{barf_forward_fm.1} parent=43 // pred_fallthru
          _
        // Predicated region
        $region57: #{barf_forward_fm.1} parent=43 // pred_check
          %p279 = pneg %p151
        $region58: #{barf_forward_fm.1} parent=43 // pred_check_branch
          %281 = sbr.rel (%p279) target = $region60
        $region59: #{barf_forward_fm.1} parent=43 // pred_region
          %282 = dma.done [#allocation9], 64
        $region60: #{barf_forward_fm.1} parent=43 // pred_fallthru
          _
        %s283 = sand.u32 %s33, 1
        %s284 = scalar_lea.sflag [#allocation3], %s283
        %s285 = sand.u32 %s33, 1
        %s286 = smul.addr %s285, 4
        %s287 = scalar_lea.vmem [#allocation2], %s286
        %p288 = pneg %p46
        %p289 = pneg %p43
        %p290 = pneg %p67
        %p291 = pneg %p64
        %p292 = pneg %p88
        %p293 = pneg %p85
        %p294 = pneg %p109
        %p295 = pneg %p106
        %p296 = pneg %p130
        %p297 = pneg %p127
        %p298 = pneg %p151
        %p299 = pneg %p148
        %p300 = pneg %p177
        %p301 = pneg %p174
        %s302 = sand.u32 %s164, 1
        %s303 = scalar_lea.sflag [#allocation4], %s302
        %s304 = sand.u32 %s164, 1
        %s305 = smul.addr %s304, 4
        %s306 = scalar_lea.vmem [#allocation10], %s305
        %v307 = vld [vmem:[%s266] sm:$0x7]
        %v308 = vld [vmem:[%s1] sm:$0xff]
        %v309 = vld [vmem:[%s1 + $0x8] sm:$0xff]
        %v310 = vld [vmem:[%s1 + $0x10] sm:$0xff]
        %v311 = vld [vmem:[%s1 + $0x18] sm:$0xff]
        %v312 = vld [vmem:[%s1 + $0x20] sm:$0xff]
        %v313 = vld [vmem:[%s1 + $0x28] sm:$0xff]
        %v314 = vld [vmem:[%s1 + $0x30] sm:$0xff]
        %v315 = vld [vmem:[%s1 + $0x38] sm:$0xff]
        %v316 = vld [vmem:[%s1 + $0x40] sm:$0xff]
        %v317 = vld [vmem:[%s1 + $0x48] sm:$0xff]
        %v318 = vld [vmem:[%s1 + $0x50] sm:$0xff]
        %v319 = vld [vmem:[%s1 + $0x58] sm:$0xff]
        %v320 = vld [vmem:[%s1 + $0x60] sm:$0xff]
        %v321 = vld [vmem:[%s1 + $0x68] sm:$0xff]
        %v322 = vld [vmem:[%s1 + $0x70] sm:$0xff]
        %v323 = vld [vmem:[%s1 + $0x78] sm:$0xff]
        %vm324 = vcmask 1042432
        %v325 = vsel %vm324, %v307, 1.0
        %vm326 = vcmask 1043456
        %v327 = vsel %vm326, %v325, 0.0
        %vm328 = vcmask 64512
        %v330 = vsel %vm328, %v308, 0
        %v333 = vsel %vm328, %v309, 0
        %v336 = vsel %vm328, %v310, 0
        %v339 = vsel %vm328, %v311, 0
        %v342 = vsel %vm328, %v312, 0
        %v345 = vsel %vm328, %v313, 0
        %v348 = vsel %vm328, %v314, 0
        %v351 = vsel %vm328, %v315, 0
        %v354 = vsel %vm328, %v316, 0
        %v357 = vsel %vm328, %v317, 0
        %v360 = vsel %vm328, %v318, 0
        %v363 = vsel %vm328, %v319, 0
        %v366 = vsel %vm328, %v320, 0
        %v369 = vsel %vm328, %v321, 0
        %v372 = vsel %vm328, %v322, 0
        %v375 = vsel %vm328, %v323, 0
        %377 = vmatprep.subr.mxu0 0.0
        %378 = vmatpush1.msra.mxu0 0.0
        %379 = vmatprep.subr.mxu0 0.0
        %380 = vmatpush1.msra.mxu0 0.0
        %381 = vmatprep.subr.mxu0 0.0
        %382 = vmatpush1.msra.mxu0 0.0
        %383 = vmatprep.subr.mxu0 0.0
        %384 = vmatpush1.msra.mxu0 0.0
        %385 = vmatprep.subr.mxu0 0.0
        %386 = vmatpush1.msra.mxu0 0.0
        %387 = vmatprep.subr.mxu0 0.0
        %388 = vmatpush1.msra.mxu0 0.0
        %389 = vmatprep.subr.mxu0 0.0
        %390 = vmatpush1.msra.mxu0 0.0
        %391 = vmatprep.subr.mxu0 0.0
        %392 = vmatpush1.msra.mxu0 0.0
        %393 = vmatprep.subr.mxu0 0.0
        %394 = vmatpush1.msra.mxu0 0.0
        %395 = vmatprep.subr.mxu0 0.0
        %396 = vmatpush1.msra.mxu0 0.0
        %397 = vmatprep.subr.mxu0 0.0
        %398 = vmatpush1.msra.mxu0 0.0
        %399 = vmatprep.subr.mxu0 0.0
        %400 = vmatpush1.msra.mxu0 0.0
        %401 = vmatprep.subr.mxu0 0.0
        %402 = vmatpush1.msra.mxu0 0.0
        %403 = vmatprep.subr.mxu0 0.0
        %404 = vmatpush1.msra.mxu0 0.0
        %405 = vmatprep.subr.mxu0 0.0
        %406 = vmatpush1.msra.mxu0 0.0
        %407 = vmatprep.subr.mxu0 0.0
        %408 = vmatpush1.msra.mxu0 %v327
        %409 = vmatprep.subr.mxu0 0.0
        %410 = vmatpush2.msra.mxu0 0.0
        %411 = vmatprep.subr.mxu0 0.0
        %412 = vmatpush2.msra.mxu0 0.0
        %413 = vmatprep.subr.mxu0 0.0
        %414 = vmatpush2.msra.mxu0 0.0
        %415 = vmatprep.subr.mxu0 0.0
        %416 = vmatpush2.msra.mxu0 0.0
        %417 = vmatprep.subr.mxu0 0.0
        %418 = vmatpush2.msra.mxu0 0.0
        %419 = vmatprep.subr.mxu0 0.0
        %420 = vmatpush2.msra.mxu0 0.0
        %421 = vmatprep.subr.mxu0 0.0
        %422 = vmatpush2.msra.mxu0 0.0
        %423 = vmatprep.subr.mxu0 0.0
        %424 = vmatpush2.msra.mxu0 0.0
        %425 = vmatprep.subr.mxu0 0.0
        %426 = vmatpush2.msra.mxu0 0.0
        %427 = vmatprep.subr.mxu0 0.0
        %428 = vmatpush2.msra.mxu0 0.0
        %429 = vmatprep.subr.mxu0 0.0
        %430 = vmatpush2.msra.mxu0 0.0
        %431 = vmatprep.subr.mxu0 0.0
        %432 = vmatpush2.msra.mxu0 0.0
        %433 = vmatprep.subr.mxu0 0.0
        %434 = vmatpush2.msra.mxu0 0.0
        %435 = vmatprep.subr.mxu0 0.0
        %436 = vmatpush2.msra.mxu0 0.0
        %437 = vmatprep.subr.mxu0 0.0
        %438 = vmatpush2.msra.mxu0 0.0
        %439 = vmatprep.subr.mxu0 0.0
        %440 = vmatpush2.msra.mxu0 0.0
        %441 = vmatprep.mubr.f32.mxu0 0.0
        %442 = vmatmul.mubr.f32.gmra.mxu0 %v330
        %v443 = vpop.f32.mrf.mxu0
        %v444 = vadd.f32 0.0, %v443
        %v445 = vpop.f32.mrf.mxu0
        %446 = vmatprep.mubr.f32.mxu0 0.0
        %447 = vmatmul.mubr.f32.gmra.mxu0 %v333
        %v448 = vpop.f32.mrf.mxu0
        %v449 = vadd.f32 0.0, %v448
        %v450 = vpop.f32.mrf.mxu0
        %451 = vmatprep.mubr.f32.mxu0 0.0
        %452 = vmatmul.mubr.f32.gmra.mxu0 %v336
        %v453 = vpop.f32.mrf.mxu0
        %v454 = vadd.f32 0.0, %v453
        %v455 = vpop.f32.mrf.mxu0
        %456 = vmatprep.mubr.f32.mxu0 0.0
        %457 = vmatmul.mubr.f32.gmra.mxu0 %v339
        %v458 = vpop.f32.mrf.mxu0
        %v459 = vadd.f32 0.0, %v458
        %v460 = vpop.f32.mrf.mxu0
        %461 = vmatprep.mubr.f32.mxu0 0.0
        %462 = vmatmul.mubr.f32.gmra.mxu0 %v342
        %v463 = vpop.f32.mrf.mxu0
        %v464 = vadd.f32 0.0, %v463
        %v465 = vpop.f32.mrf.mxu0
        %466 = vmatprep.mubr.f32.mxu0 0.0
        %467 = vmatmul.mubr.f32.gmra.mxu0 %v345
        %v468 = vpop.f32.mrf.mxu0
        %v469 = vadd.f32 0.0, %v468
        %v470 = vpop.f32.mrf.mxu0
        %471 = vmatprep.mubr.f32.mxu0 0.0
        %472 = vmatmul.mubr.f32.gmra.mxu0 %v348
        %v473 = vpop.f32.mrf.mxu0
        %v474 = vadd.f32 0.0, %v473
        %v475 = vpop.f32.mrf.mxu0
        %476 = vmatprep.mubr.f32.mxu0 0.0
        %477 = vmatmul.mubr.f32.gmra.mxu0 %v351
        %v478 = vpop.f32.mrf.mxu0
        %v479 = vadd.f32 0.0, %v478
        %v480 = vpop.f32.mrf.mxu0
        %481 = vmatprep.mubr.f32.mxu0 0.0
        %482 = vmatmul.mubr.f32.gmra.mxu0 %v354
        %v483 = vpop.f32.mrf.mxu0
        %v484 = vadd.f32 0.0, %v483
        %v485 = vpop.f32.mrf.mxu0
        %486 = vmatprep.mubr.f32.mxu0 0.0
        %487 = vmatmul.mubr.f32.gmra.mxu0 %v357
        %v488 = vpop.f32.mrf.mxu0
        %v489 = vadd.f32 0.0, %v488
        %v490 = vpop.f32.mrf.mxu0
        %491 = vmatprep.mubr.f32.mxu0 0.0
        %492 = vmatmul.mubr.f32.gmra.mxu0 %v360
        %v493 = vpop.f32.mrf.mxu0
        %v494 = vadd.f32 0.0, %v493
        %v495 = vpop.f32.mrf.mxu0
        %496 = vmatprep.mubr.f32.mxu0 0.0
        %497 = vmatmul.mubr.f32.gmra.mxu0 %v363
        %v498 = vpop.f32.mrf.mxu0
        %v499 = vadd.f32 0.0, %v498
        %v500 = vpop.f32.mrf.mxu0
        %501 = vmatprep.mubr.f32.mxu0 0.0
        %502 = vmatmul.mubr.f32.gmra.mxu0 %v366
        %v503 = vpop.f32.mrf.mxu0
        %v504 = vadd.f32 0.0, %v503
        %v505 = vpop.f32.mrf.mxu0
        %506 = vmatprep.mubr.f32.mxu0 0.0
        %507 = vmatmul.mubr.f32.gmra.mxu0 %v369
        %v508 = vpop.f32.mrf.mxu0
        %v509 = vadd.f32 0.0, %v508
        %v510 = vpop.f32.mrf.mxu0
        %511 = vmatprep.mubr.f32.mxu0 0.0
        %512 = vmatmul.mubr.f32.gmra.mxu0 %v372
        %v513 = vpop.f32.mrf.mxu0
        %v514 = vadd.f32 0.0, %v513
        %v515 = vpop.f32.mrf.mxu0
        %516 = vmatprep.mubr.f32.mxu0 0.0
        %517 = vmatmul.mubr.f32.gmra.mxu0 %v375
        %v518 = vpop.f32.mrf.mxu0
        %v519 = vadd.f32 0.0, %v518
        %v520 = vpop.f32.mrf.mxu0
        %521 = vdwg.mxu0
        %v522 = vmax.f32 %v444, 0.0
        %v523 = vmax.f32 %v449, 0.0
        %v524 = vmax.f32 %v454, 0.0
        %v525 = vmax.f32 %v459, 0.0
        %v526 = vmax.f32 %v464, 0.0
        %v527 = vmax.f32 %v469, 0.0
        %v528 = vmax.f32 %v474, 0.0
        %v529 = vmax.f32 %v479, 0.0
        %v530 = vmax.f32 %v484, 0.0
        %v531 = vmax.f32 %v489, 0.0
        %v532 = vmax.f32 %v494, 0.0
        %v533 = vmax.f32 %v499, 0.0
        %v534 = vmax.f32 %v504, 0.0
        %v535 = vmax.f32 %v509, 0.0
        %v536 = vmax.f32 %v514, 0.0
        %v537 = vmax.f32 %v519, 0.0
        %v538 = vld [vmem:[%s2] sm:$0xff]
        %v539 = vld [vmem:[%s2 + $0x8] sm:$0xff]
        %v540 = vld [vmem:[%s2 + $0x10] sm:$0xff]
        %v541 = vld [vmem:[%s2 + $0x18] sm:$0xff]
        %v542 = vld [vmem:[%s2 + $0x20] sm:$0xff]
        %v543 = vld [vmem:[%s2 + $0x28] sm:$0xff]
        %v544 = vld [vmem:[%s2 + $0x30] sm:$0xff]
        %v545 = vld [vmem:[%s2 + $0x38] sm:$0xff]
        %v546 = vld [vmem:[%s2 + $0x40] sm:$0xff]
        %v547 = vld [vmem:[%s2 + $0x48] sm:$0xff]
        %v548 = vld [vmem:[%s2 + $0x50] sm:$0xff]
        %v549 = vld [vmem:[%s2 + $0x58] sm:$0xff]
        %v550 = vld [vmem:[%s2 + $0x60] sm:$0xff]
        %v551 = vld [vmem:[%s2 + $0x68] sm:$0xff]
        %v552 = vld [vmem:[%s2 + $0x70] sm:$0xff]
        %v553 = vld [vmem:[%s2 + $0x78] sm:$0xff]
        %v554 = vld [vmem:[#allocation5] sm:$0xff]
        %v555 = vld [vmem:[#allocation5 + $0x8] sm:$0xff]
        %v556 = vld [vmem:[#allocation5 + $0x10] sm:$0xff]
        %v557 = vld [vmem:[#allocation5 + $0x18] sm:$0xff]
        %v558 = vld [vmem:[#allocation5 + $0x20] sm:$0xff]
        %v559 = vld [vmem:[#allocation5 + $0x28] sm:$0xff]
        %v560 = vld [vmem:[#allocation5 + $0x30] sm:$0xff]
        %v561 = vld [vmem:[#allocation5 + $0x38] sm:$0xff]
        %v562 = vld [vmem:[#allocation5 + $0x40] sm:$0xff]
        %v563 = vld [vmem:[#allocation5 + $0x48] sm:$0xff]
        %v564 = vld [vmem:[#allocation5 + $0x50] sm:$0xff]
        %v565 = vld [vmem:[#allocation5 + $0x58] sm:$0xff]
        %v566 = vld [vmem:[#allocation5 + $0x60] sm:$0xff]
        %v567 = vld [vmem:[#allocation5 + $0x68] sm:$0xff]
        %v568 = vld [vmem:[#allocation5 + $0x70] sm:$0xff]
        %v569 = vld [vmem:[#allocation5 + $0x78] sm:$0xff]
        %570 = vmatprep.subr.mxu0 0.0
        %571 = vmatpush1.msra.mxu0 %v537
        %572 = vmatprep.subr.mxu0 0.0
        %573 = vmatpush1.msra.mxu0 %v536
        %574 = vmatprep.subr.mxu0 0.0
        %575 = vmatpush1.msra.mxu0 %v535
        %576 = vmatprep.subr.mxu0 0.0
        %577 = vmatpush1.msra.mxu0 %v534
        %578 = vmatprep.subr.mxu0 0.0
        %579 = vmatpush1.msra.mxu0 %v533
        %580 = vmatprep.subr.mxu0 0.0
        %581 = vmatpush1.msra.mxu0 %v532
        %582 = vmatprep.subr.mxu0 0.0
        %583 = vmatpush1.msra.mxu0 %v531
        %584 = vmatprep.subr.mxu0 0.0
        %585 = vmatpush1.msra.mxu0 %v530
        %586 = vmatprep.subr.mxu0 0.0
        %587 = vmatpush1.msra.mxu0 %v529
        %588 = vmatprep.subr.mxu0 0.0
        %589 = vmatpush1.msra.mxu0 %v528
        %590 = vmatprep.subr.mxu0 0.0
        %591 = vmatpush1.msra.mxu0 %v527
        %592 = vmatprep.subr.mxu0 0.0
        %593 = vmatpush1.msra.mxu0 %v526
        %594 = vmatprep.subr.mxu0 0.0
        %595 = vmatpush1.msra.mxu0 %v525
        %596 = vmatprep.subr.mxu0 0.0
        %597 = vmatpush1.msra.mxu0 %v524
        %598 = vmatprep.subr.mxu0 0.0
        %599 = vmatpush1.msra.mxu0 %v523
        %600 = vmatprep.subr.mxu0 0.0
        %601 = vmatpush1.msra.mxu0 %v522
        %602 = vmatprep.subr.mxu0 0.0
        %603 = vmatpush2.msra.mxu0 0.0
        %604 = vmatprep.subr.mxu0 0.0
        %605 = vmatpush2.msra.mxu0 0.0
        %606 = vmatprep.subr.mxu0 0.0
        %607 = vmatpush2.msra.mxu0 0.0
        %608 = vmatprep.subr.mxu0 0.0
        %609 = vmatpush2.msra.mxu0 0.0
        %610 = vmatprep.subr.mxu0 0.0
        %611 = vmatpush2.msra.mxu0 0.0
        %612 = vmatprep.subr.mxu0 0.0
        %613 = vmatpush2.msra.mxu0 0.0
        %614 = vmatprep.subr.mxu0 0.0
        %615 = vmatpush2.msra.mxu0 0.0
        %616 = vmatprep.subr.mxu0 0.0
        %617 = vmatpush2.msra.mxu0 0.0
        %618 = vmatprep.subr.mxu0 0.0
        %619 = vmatpush2.msra.mxu0 0.0
        %620 = vmatprep.subr.mxu0 0.0
        %621 = vmatpush2.msra.mxu0 0.0
        %622 = vmatprep.subr.mxu0 0.0
        %623 = vmatpush2.msra.mxu0 0.0
        %624 = vmatprep.subr.mxu0 0.0
        %625 = vmatpush2.msra.mxu0 0.0
        %626 = vmatprep.subr.mxu0 0.0
        %627 = vmatpush2.msra.mxu0 0.0
        %628 = vmatprep.subr.mxu0 0.0
        %629 = vmatpush2.msra.mxu0 0.0
        %630 = vmatprep.subr.mxu0 0.0
        %631 = vmatpush2.msra.mxu0 0.0
        %632 = vmatprep.subr.mxu0 0.0
        %633 = vmatpush2.msra.mxu0 0.0
        %634 = vmatprep.mubr.f32.mxu0 0.0
        %635 = vmatmul.mubr.f32.gmra.mxu0 %v538
        %v636 = vpop.f32.mrf.mxu0
        %v637 = vadd.f32 %v554, %v636
        %v638 = vpop.f32.mrf.mxu0
        %639 = vmatprep.mubr.f32.mxu0 0.0
        %640 = vmatmul.mubr.f32.gmra.mxu0 %v539
        %v641 = vpop.f32.mrf.mxu0
        %v642 = vadd.f32 %v555, %v641
        %v643 = vpop.f32.mrf.mxu0
        %644 = vmatprep.mubr.f32.mxu0 0.0
        %645 = vmatmul.mubr.f32.gmra.mxu0 %v540
        %v646 = vpop.f32.mrf.mxu0
        %v647 = vadd.f32 %v556, %v646
        %v648 = vpop.f32.mrf.mxu0
        %649 = vmatprep.mubr.f32.mxu0 0.0
        %650 = vmatmul.mubr.f32.gmra.mxu0 %v541
        %v651 = vpop.f32.mrf.mxu0
        %v652 = vadd.f32 %v557, %v651
        %v653 = vpop.f32.mrf.mxu0
        %654 = vmatprep.mubr.f32.mxu0 0.0
        %655 = vmatmul.mubr.f32.gmra.mxu0 %v542
        %v656 = vpop.f32.mrf.mxu0
        %v657 = vadd.f32 %v558, %v656
        %v658 = vpop.f32.mrf.mxu0
        %659 = vmatprep.mubr.f32.mxu0 0.0
        %660 = vmatmul.mubr.f32.gmra.mxu0 %v543
        %v661 = vpop.f32.mrf.mxu0
        %v662 = vadd.f32 %v559, %v661
        %v663 = vpop.f32.mrf.mxu0
        %664 = vmatprep.mubr.f32.mxu0 0.0
        %665 = vmatmul.mubr.f32.gmra.mxu0 %v544
        %v666 = vpop.f32.mrf.mxu0
        %v667 = vadd.f32 %v560, %v666
        %v668 = vpop.f32.mrf.mxu0
        %669 = vmatprep.mubr.f32.mxu0 0.0
        %670 = vmatmul.mubr.f32.gmra.mxu0 %v545
        %v671 = vpop.f32.mrf.mxu0
        %v672 = vadd.f32 %v561, %v671
        %v673 = vpop.f32.mrf.mxu0
        %674 = vmatprep.mubr.f32.mxu0 0.0
        %675 = vmatmul.mubr.f32.gmra.mxu0 %v546
        %v676 = vpop.f32.mrf.mxu0
        %v677 = vadd.f32 %v562, %v676
        %v678 = vpop.f32.mrf.mxu0
        %679 = vmatprep.mubr.f32.mxu0 0.0
        %680 = vmatmul.mubr.f32.gmra.mxu0 %v547
        %v681 = vpop.f32.mrf.mxu0
        %v682 = vadd.f32 %v563, %v681
        %v683 = vpop.f32.mrf.mxu0
        %684 = vmatprep.mubr.f32.mxu0 0.0
        %685 = vmatmul.mubr.f32.gmra.mxu0 %v548
        %v686 = vpop.f32.mrf.mxu0
        %v687 = vadd.f32 %v564, %v686
        %v688 = vpop.f32.mrf.mxu0
        %689 = vmatprep.mubr.f32.mxu0 0.0
        %690 = vmatmul.mubr.f32.gmra.mxu0 %v549
        %v691 = vpop.f32.mrf.mxu0
        %v692 = vadd.f32 %v565, %v691
        %v693 = vpop.f32.mrf.mxu0
        %694 = vmatprep.mubr.f32.mxu0 0.0
        %695 = vmatmul.mubr.f32.gmra.mxu0 %v550
        %v696 = vpop.f32.mrf.mxu0
        %v697 = vadd.f32 %v566, %v696
        %v698 = vpop.f32.mrf.mxu0
        %699 = vmatprep.mubr.f32.mxu0 0.0
        %700 = vmatmul.mubr.f32.gmra.mxu0 %v551
        %v701 = vpop.f32.mrf.mxu0
        %v702 = vadd.f32 %v567, %v701
        %v703 = vpop.f32.mrf.mxu0
        %704 = vmatprep.mubr.f32.mxu0 0.0
        %705 = vmatmul.mubr.f32.gmra.mxu0 %v552
        %v706 = vpop.f32.mrf.mxu0
        %v707 = vadd.f32 %v568, %v706
        %v708 = vpop.f32.mrf.mxu0
        %709 = vmatprep.mubr.f32.mxu0 0.0
        %710 = vmatmul.mubr.f32.gmra.mxu0 %v553
        %v711 = vpop.f32.mrf.mxu0
        %v712 = vadd.f32 %v569, %v711
        %v713 = vpop.f32.mrf.mxu0
        %714 = vdwg.mxu0
        %v715 = vmax.f32 %v637, 0.0
        %v716 = vmax.f32 %v642, 0.0
        %v717 = vmax.f32 %v647, 0.0
        %v718 = vmax.f32 %v652, 0.0
        %v719 = vmax.f32 %v657, 0.0
        %v720 = vmax.f32 %v662, 0.0
        %v721 = vmax.f32 %v667, 0.0
        %v722 = vmax.f32 %v672, 0.0
        %v723 = vmax.f32 %v677, 0.0
        %v724 = vmax.f32 %v682, 0.0
        %v725 = vmax.f32 %v687, 0.0
        %v726 = vmax.f32 %v692, 0.0
        %v727 = vmax.f32 %v697, 0.0
        %v728 = vmax.f32 %v702, 0.0
        %v729 = vmax.f32 %v707, 0.0
        %v730 = vmax.f32 %v712, 0.0
        %s731 = scalar_lea.vmem %s2, 128
        %v732 = vld [vmem:[%s731] sm:$0xff]
        %v733 = vld [vmem:[%s731 + $0x8] sm:$0xff]
        %v734 = vld [vmem:[%s731 + $0x10] sm:$0xff]
        %v735 = vld [vmem:[%s731 + $0x18] sm:$0xff]
        %v736 = vld [vmem:[%s731 + $0x20] sm:$0xff]
        %v737 = vld [vmem:[%s731 + $0x28] sm:$0xff]
        %v738 = vld [vmem:[%s731 + $0x30] sm:$0xff]
        %v739 = vld [vmem:[%s731 + $0x38] sm:$0xff]
        %v740 = vld [vmem:[%s731 + $0x40] sm:$0xff]
        %v741 = vld [vmem:[%s731 + $0x48] sm:$0xff]
        %v742 = vld [vmem:[%s731 + $0x50] sm:$0xff]
        %v743 = vld [vmem:[%s731 + $0x58] sm:$0xff]
        %v744 = vld [vmem:[%s731 + $0x60] sm:$0xff]
        %v745 = vld [vmem:[%s731 + $0x68] sm:$0xff]
        %v746 = vld [vmem:[%s731 + $0x70] sm:$0xff]
        %v747 = vld [vmem:[%s731 + $0x78] sm:$0xff]
        %s748 = scalar_lea.vmem [#allocation5], 128
        %v749 = vld [vmem:[%s748] sm:$0xff]
        %v750 = vld [vmem:[%s748 + $0x8] sm:$0xff]
        %v751 = vld [vmem:[%s748 + $0x10] sm:$0xff]
        %v752 = vld [vmem:[%s748 + $0x18] sm:$0xff]
        %v753 = vld [vmem:[%s748 + $0x20] sm:$0xff]
        %v754 = vld [vmem:[%s748 + $0x28] sm:$0xff]
        %v755 = vld [vmem:[%s748 + $0x30] sm:$0xff]
        %v756 = vld [vmem:[%s748 + $0x38] sm:$0xff]
        %v757 = vld [vmem:[%s748 + $0x40] sm:$0xff]
        %v758 = vld [vmem:[%s748 + $0x48] sm:$0xff]
        %v759 = vld [vmem:[%s748 + $0x50] sm:$0xff]
        %v760 = vld [vmem:[%s748 + $0x58] sm:$0xff]
        %v761 = vld [vmem:[%s748 + $0x60] sm:$0xff]
        %v762 = vld [vmem:[%s748 + $0x68] sm:$0xff]
        %v763 = vld [vmem:[%s748 + $0x70] sm:$0xff]
        %v764 = vld [vmem:[%s748 + $0x78] sm:$0xff]
        %765 = vmatprep.subr.mxu0 0.0
        %766 = vmatpush1.msra.mxu0 %v730
        %767 = vmatprep.subr.mxu0 0.0
        %768 = vmatpush1.msra.mxu0 %v729
        %769 = vmatprep.subr.mxu0 0.0
        %770 = vmatpush1.msra.mxu0 %v728
        %771 = vmatprep.subr.mxu0 0.0
        %772 = vmatpush1.msra.mxu0 %v727
        %773 = vmatprep.subr.mxu0 0.0
        %774 = vmatpush1.msra.mxu0 %v726
        %775 = vmatprep.subr.mxu0 0.0
        %776 = vmatpush1.msra.mxu0 %v725
        %777 = vmatprep.subr.mxu0 0.0
        %778 = vmatpush1.msra.mxu0 %v724
        %779 = vmatprep.subr.mxu0 0.0
        %780 = vmatpush1.msra.mxu0 %v723
        %781 = vmatprep.subr.mxu0 0.0
        %782 = vmatpush1.msra.mxu0 %v722
        %783 = vmatprep.subr.mxu0 0.0
        %784 = vmatpush1.msra.mxu0 %v721
        %785 = vmatprep.subr.mxu0 0.0
        %786 = vmatpush1.msra.mxu0 %v720
        %787 = vmatprep.subr.mxu0 0.0
        %788 = vmatpush1.msra.mxu0 %v719
        %789 = vmatprep.subr.mxu0 0.0
        %790 = vmatpush1.msra.mxu0 %v718
        %791 = vmatprep.subr.mxu0 0.0
        %792 = vmatpush1.msra.mxu0 %v717
        %793 = vmatprep.subr.mxu0 0.0
        %794 = vmatpush1.msra.mxu0 %v716
        %795 = vmatprep.subr.mxu0 0.0
        %796 = vmatpush1.msra.mxu0 %v715
        %797 = vmatprep.subr.mxu0 0.0
        %798 = vmatpush2.msra.mxu0 0.0
        %799 = vmatprep.subr.mxu0 0.0
        %800 = vmatpush2.msra.mxu0 0.0
        %801 = vmatprep.subr.mxu0 0.0
        %802 = vmatpush2.msra.mxu0 0.0
        %803 = vmatprep.subr.mxu0 0.0
        %804 = vmatpush2.msra.mxu0 0.0
        %805 = vmatprep.subr.mxu0 0.0
        %806 = vmatpush2.msra.mxu0 0.0
        %807 = vmatprep.subr.mxu0 0.0
        %808 = vmatpush2.msra.mxu0 0.0
        %809 = vmatprep.subr.mxu0 0.0
        %810 = vmatpush2.msra.mxu0 0.0
        %811 = vmatprep.subr.mxu0 0.0
        %812 = vmatpush2.msra.mxu0 0.0
        %813 = vmatprep.subr.mxu0 0.0
        %814 = vmatpush2.msra.mxu0 0.0
        %815 = vmatprep.subr.mxu0 0.0
        %816 = vmatpush2.msra.mxu0 0.0
        %817 = vmatprep.subr.mxu0 0.0
        %818 = vmatpush2.msra.mxu0 0.0
        %819 = vmatprep.subr.mxu0 0.0
        %820 = vmatpush2.msra.mxu0 0.0
        %821 = vmatprep.subr.mxu0 0.0
        %822 = vmatpush2.msra.mxu0 0.0
        %823 = vmatprep.subr.mxu0 0.0
        %824 = vmatpush2.msra.mxu0 0.0
        %825 = vmatprep.subr.mxu0 0.0
        %826 = vmatpush2.msra.mxu0 0.0
        %827 = vmatprep.subr.mxu0 0.0
        %828 = vmatpush2.msra.mxu0 0.0
        %829 = vmatprep.mubr.f32.mxu0 0.0
        %830 = vmatmul.mubr.f32.gmra.mxu0 %v732
        %v831 = vpop.f32.mrf.mxu0
        %v832 = vadd.f32 %v749, %v831
        %v833 = vpop.f32.mrf.mxu0
        %834 = vmatprep.mubr.f32.mxu0 0.0
        %835 = vmatmul.mubr.f32.gmra.mxu0 %v733
        %v836 = vpop.f32.mrf.mxu0
        %v837 = vadd.f32 %v750, %v836
        %v838 = vpop.f32.mrf.mxu0
        %839 = vmatprep.mubr.f32.mxu0 0.0
        %840 = vmatmul.mubr.f32.gmra.mxu0 %v734
        %v841 = vpop.f32.mrf.mxu0
        %v842 = vadd.f32 %v751, %v841
        %v843 = vpop.f32.mrf.mxu0
        %844 = vmatprep.mubr.f32.mxu0 0.0
        %845 = vmatmul.mubr.f32.gmra.mxu0 %v735
        %v846 = vpop.f32.mrf.mxu0
        %v847 = vadd.f32 %v752, %v846
        %v848 = vpop.f32.mrf.mxu0
        %849 = vmatprep.mubr.f32.mxu0 0.0
        %850 = vmatmul.mubr.f32.gmra.mxu0 %v736
        %v851 = vpop.f32.mrf.mxu0
        %v852 = vadd.f32 %v753, %v851
        %v853 = vpop.f32.mrf.mxu0
        %854 = vmatprep.mubr.f32.mxu0 0.0
        %855 = vmatmul.mubr.f32.gmra.mxu0 %v737
        %v856 = vpop.f32.mrf.mxu0
        %v857 = vadd.f32 %v754, %v856
        %v858 = vpop.f32.mrf.mxu0
        %859 = vmatprep.mubr.f32.mxu0 0.0
        %860 = vmatmul.mubr.f32.gmra.mxu0 %v738
        %v861 = vpop.f32.mrf.mxu0
        %v862 = vadd.f32 %v755, %v861
        %v863 = vpop.f32.mrf.mxu0
        %864 = vmatprep.mubr.f32.mxu0 0.0
        %865 = vmatmul.mubr.f32.gmra.mxu0 %v739
        %v866 = vpop.f32.mrf.mxu0
        %v867 = vadd.f32 %v756, %v866
        %v868 = vpop.f32.mrf.mxu0
        %869 = vmatprep.mubr.f32.mxu0 0.0
        %870 = vmatmul.mubr.f32.gmra.mxu0 %v740
        %v871 = vpop.f32.mrf.mxu0
        %v872 = vadd.f32 %v757, %v871
        %v873 = vpop.f32.mrf.mxu0
        %874 = vmatprep.mubr.f32.mxu0 0.0
        %875 = vmatmul.mubr.f32.gmra.mxu0 %v741
        %v876 = vpop.f32.mrf.mxu0
        %v877 = vadd.f32 %v758, %v876
        %v878 = vpop.f32.mrf.mxu0
        %879 = vmatprep.mubr.f32.mxu0 0.0
        %880 = vmatmul.mubr.f32.gmra.mxu0 %v742
        %v881 = vpop.f32.mrf.mxu0
        %v882 = vadd.f32 %v759, %v881
        %v883 = vpop.f32.mrf.mxu0
        %884 = vmatprep.mubr.f32.mxu0 0.0
        %885 = vmatmul.mubr.f32.gmra.mxu0 %v743
        %v886 = vpop.f32.mrf.mxu0
        %v887 = vadd.f32 %v760, %v886
        %v888 = vpop.f32.mrf.mxu0
        %889 = vmatprep.mubr.f32.mxu0 0.0
        %890 = vmatmul.mubr.f32.gmra.mxu0 %v744
        %v891 = vpop.f32.mrf.mxu0
        %v892 = vadd.f32 %v761, %v891
        %v893 = vpop.f32.mrf.mxu0
        %894 = vmatprep.mubr.f32.mxu0 0.0
        %895 = vmatmul.mubr.f32.gmra.mxu0 %v745
        %v896 = vpop.f32.mrf.mxu0
        %v897 = vadd.f32 %v762, %v896
        %v898 = vpop.f32.mrf.mxu0
        %899 = vmatprep.mubr.f32.mxu0 0.0
        %900 = vmatmul.mubr.f32.gmra.mxu0 %v746
        %v901 = vpop.f32.mrf.mxu0
        %v902 = vadd.f32 %v763, %v901
        %v903 = vpop.f32.mrf.mxu0
        %904 = vmatprep.mubr.f32.mxu0 0.0
        %905 = vmatmul.mubr.f32.gmra.mxu0 %v747
        %v906 = vpop.f32.mrf.mxu0
        %v907 = vadd.f32 %v764, %v906
        %v908 = vpop.f32.mrf.mxu0
        %909 = vdwg.mxu0
        %v910 = vmax.f32 %v832, 0.0
        %v911 = vmax.f32 %v837, 0.0
        %v912 = vmax.f32 %v842, 0.0
        %v913 = vmax.f32 %v847, 0.0
        %v914 = vmax.f32 %v852, 0.0
        %v915 = vmax.f32 %v857, 0.0
        %v916 = vmax.f32 %v862, 0.0
        %v917 = vmax.f32 %v867, 0.0
        %v918 = vmax.f32 %v872, 0.0
        %v919 = vmax.f32 %v877, 0.0
        %v920 = vmax.f32 %v882, 0.0
        %v921 = vmax.f32 %v887, 0.0
        %v922 = vmax.f32 %v892, 0.0
        %v923 = vmax.f32 %v897, 0.0
        %v924 = vmax.f32 %v902, 0.0
        %v925 = vmax.f32 %v907, 0.0
        %v926 = vld [vmem:[#allocation7] sm:$0xf]
        %v927 = vld [vmem:[#allocation8] sm:$0xf]
        %928 = vmatprep.subr.mxu0 0.0
        %929 = vmatpush1.msra.mxu0 %v925
        %930 = vmatprep.subr.mxu0 0.0
        %931 = vmatpush1.msra.mxu0 %v924
        %932 = vmatprep.subr.mxu0 0.0
        %933 = vmatpush1.msra.mxu0 %v923
        %934 = vmatprep.subr.mxu0 0.0
        %935 = vmatpush1.msra.mxu0 %v922
        %936 = vmatprep.subr.mxu0 0.0
        %937 = vmatpush1.msra.mxu0 %v921
        %938 = vmatprep.subr.mxu0 0.0
        %939 = vmatpush1.msra.mxu0 %v920
        %940 = vmatprep.subr.mxu0 0.0
        %941 = vmatpush1.msra.mxu0 %v919
        %942 = vmatprep.subr.mxu0 0.0
        %943 = vmatpush1.msra.mxu0 %v918
        %944 = vmatprep.subr.mxu0 0.0
        %945 = vmatpush1.msra.mxu0 %v917
        %946 = vmatprep.subr.mxu0 0.0
        %947 = vmatpush1.msra.mxu0 %v916
        %948 = vmatprep.subr.mxu0 0.0
        %949 = vmatpush1.msra.mxu0 %v915
        %950 = vmatprep.subr.mxu0 0.0
        %951 = vmatpush1.msra.mxu0 %v914
        %952 = vmatprep.subr.mxu0 0.0
        %953 = vmatpush1.msra.mxu0 %v913
        %954 = vmatprep.subr.mxu0 0.0
        %955 = vmatpush1.msra.mxu0 %v912
        %956 = vmatprep.subr.mxu0 0.0
        %957 = vmatpush1.msra.mxu0 %v911
        %958 = vmatprep.subr.mxu0 0.0
        %959 = vmatpush1.msra.mxu0 %v910
        %960 = vmatprep.subr.mxu0 0.0
        %961 = vmatpush2.msra.mxu0 0.0
        %962 = vmatprep.subr.mxu0 0.0
        %963 = vmatpush2.msra.mxu0 0.0
        %964 = vmatprep.subr.mxu0 0.0
        %965 = vmatpush2.msra.mxu0 0.0
        %966 = vmatprep.subr.mxu0 0.0
        %967 = vmatpush2.msra.mxu0 0.0
        %968 = vmatprep.subr.mxu0 0.0
        %969 = vmatpush2.msra.mxu0 0.0
        %970 = vmatprep.subr.mxu0 0.0
        %971 = vmatpush2.msra.mxu0 0.0
        %972 = vmatprep.subr.mxu0 0.0
        %973 = vmatpush2.msra.mxu0 0.0
        %974 = vmatprep.subr.mxu0 0.0
        %975 = vmatpush2.msra.mxu0 0.0
        %976 = vmatprep.subr.mxu0 0.0
        %977 = vmatpush2.msra.mxu0 0.0
        %978 = vmatprep.subr.mxu0 0.0
        %979 = vmatpush2.msra.mxu0 0.0
        %980 = vmatprep.subr.mxu0 0.0
        %981 = vmatpush2.msra.mxu0 0.0
        %982 = vmatprep.subr.mxu0 0.0
        %983 = vmatpush2.msra.mxu0 0.0
        %984 = vmatprep.subr.mxu0 0.0
        %985 = vmatpush2.msra.mxu0 0.0
        %986 = vmatprep.subr.mxu0 0.0
        %987 = vmatpush2.msra.mxu0 0.0
        %988 = vmatprep.subr.mxu0 0.0
        %989 = vmatpush2.msra.mxu0 0.0
        %990 = vmatprep.subr.mxu0 0.0
        %991 = vmatpush2.msra.mxu0 0.0
        %992 = vmatprep.mubr.f32.mxu0 0.0
        %993 = vmatmul.mubr.f32.gmra.mxu0 %v926
        %v994 = vpop.f32.mrf.mxu0
        %v995 = vadd.f32 %v927, %v994
        %v996 = vpop.f32.mrf.mxu0
        %997 = vdwg.mxu0
        %v998 = vlaneseq
        %v999 = vshrl.u32 %v998, 7
        %vm1000 = vcmp.lt.s32.totalorder %v999, 3
        %v1001 = vxor.u32 %v995, 2147483648
        %v1002 = vmul.f32 %v1001, 1.442695
        %v1003 = vpow.pop %v1002
        %v1004 = vadd.f32 %v1003, 1.0
        %v1005 = vrcp.pop %v1004
        %v1006 = vmul.f32 1.0, %v1005
        %v1007 = vmax.f32 %v995, 0.0
        %v1008 = vsel %vm1000, %v1006, %v1007
        %1009 = vst [vmem:[%s306] sm:$0xf] %v1008
        %s1010 = sand.u32 %s164, 1
        %s1011 = scalar_lea.sflag [#allocation4], %s1010
        %s1012 = sand.u32 %s164, 1
        %s1013 = smul.addr %s1012, 4
        %s1014 = scalar_lea.vmem [#allocation10], %s1013
        // Predicated region
        $region61: #{barf_forward_fm.1} parent=43 // pred_check
          %p1015 = pneg %p174
        $region62: #{barf_forward_fm.1} parent=43 // pred_check_branch
          %1017 = sbr.rel (%p1015) target = $region64
        $region63: #{barf_forward_fm.1} parent=43 // pred_region
          %s1019 = ssub.s32 64, 64
          %1020 = vsyncadd %s1011, %s1019
          %s1021 = smul.addr %s25, 64
          %s1022 = scalar_lea.hbm %s6, %s1021
          %s1024 = sshll.u32 %s1014, 4
          %s1025 = int_to_ptr.vmem [resolvable:$true] %s1024
          %1027 = dma.vmem_to_hbm [thread:$0]  %s1025, 64, %s1022, %s1011
        $region64: #{barf_forward_fm.1} parent=43 // pred_fallthru
          _
      $region44: #{barf_forward_fm.1} parent=5 // pred_fallthru
        _
      %p1028 = scmp.le.s32.totalorder 2, %s20
      // Predicated region
      $region65: #{barf_forward_fm.1} parent=5 // pred_check
        %p1029 = pneg %p1028
      $region66: #{barf_forward_fm.1} parent=5 // pred_check_branch
        %1031 = sbr.rel (%p1029) target = $region68
      $region67: #{barf_forward_fm.1} parent=5 // pred_region
        %s1032 = ssub.s32 %s20, 2
        // Predicated region
        $region69: #{barf_forward_fm.1} parent=67 // pred_check
          %p1033 = pneg %p180
        $region70: #{barf_forward_fm.1} parent=67 // pred_check_branch
          %1035 = sbr.rel (%p1033) target = $region72
        $region71: #{barf_forward_fm.1} parent=67 // pred_region
          %s1036 = sand.u32 %s165, 1
          %s1037 = scalar_lea.sflag [#allocation4], %s1036
          %s1038 = sand.u32 %s165, 1
          %s1039 = smul.addr %s1038, 4
          %s1040 = scalar_lea.vmem [#allocation10], %s1039
          %1041 = dma.done %s1037, 64
        $region72: #{barf_forward_fm.1} parent=67 // pred_fallthru
          _
      $region68: #{barf_forward_fm.1} parent=5 // pred_fallthru
        _
    $region6: #{barf_forward_fm.1} parent=1 // loop_footer
      %s24 = sadd.s32 1, %s20
    $region7: #{barf_forward_fm.1} parent=1 // loop_footer_branch
      %19 = sbr.rel target = $region3
    $region8: #{barf_forward_fm.1} parent=1 // loop_exit
      _
    %1042 = vsyncpa [#allocation3], 1
    %s1043 = scalar_lea.sflag [#allocation3], 1
    %1044 = vsyncpa %s1043, 1
    %1045 = vsyncpa [#allocation6], 1
    %1046 = vsyncpa [#allocation9], 1
    %1047 = vsyncpa [#allocation4], 1
    %s1048 = scalar_lea.sflag [#allocation4], 1
    %1049 = vsyncpa %s1048, 1

// kernel: barf_forward_fm.1
$region0: #{barf_forward_fm.1}
  #allocation0 [shape = 'u32[]', space=smem, size = 0x4, offset = 0x4, fixed_abs, tag = 'smem constant byte address 0x4 - core index']
  #allocation1 [shape = 'u32[144,128]{1,0:T(1,128)}', space=vmem, size = 0x12000, scoped, tag = 'internal scratch']
  %s0 = inlined_call_operand.hbm [shape: f32[3,256], index: 0, kind: input, shape index: {}]
  %s1 = inlined_call_operand.vmem [shape: f32[128,8], index: 1, kind: input, shape index: {}]
  %s2 = inlined_call_operand.vmem [shape: f32[2,128,128], index: 2, kind: input, shape index: {}]
  %s3 = inlined_call_operand.hbm [shape: f32[2,128,128], index: 3, kind: input, shape index: {}]
  %s4 = inlined_call_operand.hbm [shape: f32[4,128], index: 4, kind: input, shape index: {}]
  %s5 = inlined_call_operand.hbm [shape: f32[4,128], index: 5, kind: input, shape index: {}]
  %s6 = inlined_call_operand.hbm [shape: f32[4,256], index: 6, kind: output, shape index: {}]
  %s7 = sld [smem:[#allocation0]]
  $region73: #{barf_forward_fm.1} parent=0
    _
  %s9 = ssub.s32 1, %s7
  %s10 = scalar_select 0, %s9, %s7
  $region1: #{barf_forward_fm.1} parent=0
    #allocation2 [shape = 'u8[4096]{0}', space=vmem, size = 0x1000, scoped, tag = 'input window, operand 0']
    #allocation3 [shape = 's32[2]{0}', space=sflag, size = 0x8, scoped, tag = 'scoped memory for barf_forward_fm.1']
    #allocation4 [shape = 's32[2]{0}', space=sflag, size = 0x8, scoped, tag = 'scoped memory for barf_forward_fm.1']
    #allocation5 [shape = 'u8[131072]{0}', space=vmem, size = 0x20000, scoped, tag = 'input window, operand 3, single buffered']
    #allocation6 [shape = 's32[1]{0}', space=sflag, size = 0x4, scoped, tag = 'scoped memory for barf_forward_fm.1']
    #allocation7 [shape = 'u8[2048]{0}', space=vmem, size = 0x800, scoped, tag = 'input window, operand 4, single buffered']
    #allocation8 [shape = 'u8[2048]{0}', space=vmem, size = 0x800, scoped, tag = 'input window, operand 5, single buffered']
    #allocation9 [shape = 's32[1]{0}', space=sflag, size = 0x4, scoped, tag = 'scoped memory for barf_forward_fm.1']
    #allocation10 [shape = 'u8[4096]{0}', space=vmem, size = 0x1000, scoped, tag = 'output window, operand 0']
    %11 = vsyncpa [#allocation3], 0
    %s12 = scalar_lea.sflag [#allocation3], 1
    %13 = vsyncpa %s12, 0
    %14 = vsyncpa [#allocation6], 0
    %15 = vsyncpa [#allocation9], 0
    %16 = vsyncpa [#allocation4], 0
    %s17 = scalar_lea.sflag [#allocation4], 1
    %18 = vsyncpa %s17, 0
    loop: start=0, step=1, limit=4
    $region2: #{barf_forward_fm.1} parent=1 // loop_pre_header
      _
    $region3: #{barf_forward_fm.1} parent=1 // loop_header
      %s20 = sphi 0, %s24
      %p21 = scmp.ge.s32.totalorder %s20, 4
      %s30 = sphi 0, %s32
      %s33 = sphi 0, %s30
      %s34 = sphi 0, %s33
      %s50 = sphi 0, %s34
      %s54 = sphi 0, %s54
      %s56 = sphi 0, %s54
      %s57 = sphi 0, %s56
      %s71 = sphi 0, %s57
      %s75 = sphi 0, %s75
      %s77 = sphi 0, %s75
      %s78 = sphi 0, %s77
      %s92 = sphi 0, %s78
      %s96 = sphi 0, %s96
      %s98 = sphi 0, %s96
      %s99 = sphi 0, %s98
      %s113 = sphi 0, %s99
      %s117 = sphi 0, %s117
      %s119 = sphi 0, %s117
      %s120 = sphi 0, %s119
      %s134 = sphi 0, %s120
      %s138 = sphi 0, %s138
      %s140 = sphi 0, %s138
      %s141 = sphi 0, %s140
      %s155 = sphi 0, %s141
      %s161 = sphi 0, %s163
      %s164 = sphi 0, %s161
      %s165 = sphi 0, %s164
      %s181 = sphi 0, %s165
    $region4: #{barf_forward_fm.1} parent=1 // loop_header_branch
      %23 = sbr.rel (%p21) target = $region8
    $region5: #{barf_forward_fm.1} parent=1 // loop_body
      %s25 = ssub.s32 %s20, 1
      %s26 = ssub.s32 %s20, 2
      %s27 = sadd.s32 %s20, 1
      %s28 = ssub.s32 %s20, %s27
      %p29 = scmp.eq.s32.totalorder %s28, 0
      %s31 = sadd.s32 %s30, 1
      %s32 = scalar_select %p29, %s30, %s31
      %p35 = pneg %p29
      %p36 = scmp.eq.s32.totalorder %s20, 1
      %p37 = por %p35, %p36
      %p38 = scmp.ne.s32.totalorder %s30, %s33
      %p39 = scmp.eq.s32.totalorder %s20, 0
      %p40 = por %p38, %p39
      %p41 = scmp.ne.s32.totalorder %s30, %s33
      %p42 = scmp.eq.s32.totalorder %s25, 1
      %p43 = por %p41, %p42
      %p44 = scmp.ne.s32.totalorder %s33, %s34
      %p45 = scmp.eq.s32.totalorder %s25, 0
      %p46 = por %p44, %p45
      %p47 = scmp.ne.s32.totalorder %s33, %s34
      %p48 = scmp.eq.s32.totalorder %s26, 1
      %p49 = por %p47, %p48
      %p51 = scmp.ne.s32.totalorder %s34, %s50
      %p52 = scmp.eq.s32.totalorder %s26, 0
      %p53 = por %p51, %p52
      %s55 = sadd.s32 %s54, 1
      %p58 = scmp.eq.s32.totalorder %s20, 1
      %p59 = scmp.ne.s32.totalorder %s54, %s56
      %p60 = scmp.eq.s32.totalorder %s20, 0
      %p61 = por %p59, %p60
      %p62 = scmp.ne.s32.totalorder %s54, %s56
      %p63 = scmp.eq.s32.totalorder %s25, 1
      %p64 = por %p62, %p63
      %p65 = scmp.ne.s32.totalorder %s56, %s57
      %p66 = scmp.eq.s32.totalorder %s25, 0
      %p67 = por %p65, %p66
      %p68 = scmp.ne.s32.totalorder %s56, %s57
      %p69 = scmp.eq.s32.totalorder %s26, 1
      %p70 = por %p68, %p69
      %p72 = scmp.ne.s32.totalorder %s57, %s71
      %p73 = scmp.eq.s32.totalorder %s26, 0
      %p74 = por %p72, %p73
      %s76 = sadd.s32 %s75, 1
      %p79 = scmp.eq.s32.totalorder %s20, 1
      %p80 = scmp.ne.s32.totalorder %s75, %s77
      %p81 = scmp.eq.s32.totalorder %s20, 0
      %p82 = por %p80, %p81
      %p83 = scmp.ne.s32.totalorder %s75, %s77
      %p84 = scmp.eq.s32.totalorder %s25, 1
      %p85 = por %p83, %p84
      %p86 = scmp.ne.s32.totalorder %s77, %s78
      %p87 = scmp.eq.s32.totalorder %s25, 0
      %p88 = por %p86, %p87
      %p89 = scmp.ne.s32.totalorder %s77, %s78
      %p90 = scmp.eq.s32.totalorder %s26, 1
      %p91 = por %p89, %p90
      %p93 = scmp.ne.s32.totalorder %s78, %s92
      %p94 = scmp.eq.s32.totalorder %s26, 0
      %p95 = por %p93, %p94
      %s97 = sadd.s32 %s96, 1
      %p100 = scmp.eq.s32.totalorder %s20, 1
      %p101 = scmp.ne.s32.totalorder %s96, %s98
      %p102 = scmp.eq.s32.totalorder %s20, 0
      %p103 = por %p101, %p102
      %p104 = scmp.ne.s32.totalorder %s96, %s98
      %p105 = scmp.eq.s32.totalorder %s25, 1
      %p106 = por %p104, %p105
      %p107 = scmp.ne.s32.totalorder %s98, %s99
      %p108 = scmp.eq.s32.totalorder %s25, 0
      %p109 = por %p107, %p108
      %p110 = scmp.ne.s32.totalorder %s98, %s99
      %p111 = scmp.eq.s32.totalorder %s26, 1
      %p112 = por %p110, %p111
      %p114 = scmp.ne.s32.totalorder %s99, %s113
      %p115 = scmp.eq.s32.totalorder %s26, 0
      %p116 = por %p114, %p115
      %s118 = sadd.s32 %s117, 1
      %p121 = scmp.eq.s32.totalorder %s20, 1
      %p122 = scmp.ne.s32.totalorder %s117, %s119
      %p123 = scmp.eq.s32.totalorder %s20, 0
      %p124 = por %p122, %p123
      %p125 = scmp.ne.s32.totalorder %s117, %s119
      %p126 = scmp.eq.s32.totalorder %s25, 1
      %p127 = por %p125, %p126
      %p128 = scmp.ne.s32.totalorder %s119, %s120
      %p129 = scmp.eq.s32.totalorder %s25, 0
      %p130 = por %p128, %p129
      %p131 = scmp.ne.s32.totalorder %s119, %s120
      %p132 = scmp.eq.s32.totalorder %s26, 1
      %p133 = por %p131, %p132
      %p135 = scmp.ne.s32.totalorder %s120, %s134
      %p136 = scmp.eq.s32.totalorder %s26, 0
      %p137 = por %p135, %p136
      %s139 = sadd.s32 %s138, 1
      %p142 = scmp.eq.s32.totalorder %s20, 1
      %p143 = scmp.ne.s32.totalorder %s138, %s140
      %p144 = scmp.eq.s32.totalorder %s20, 0
      %p145 = por %p143, %p144
      %p146 = scmp.ne.s32.totalorder %s138, %s140
      %p147 = scmp.eq.s32.totalorder %s25, 1
      %p148 = por %p146, %p147
      %p149 = scmp.ne.s32.totalorder %s140, %s141
      %p150 = scmp.eq.s32.totalorder %s25, 0
      %p151 = por %p149, %p150
      %p152 = scmp.ne.s32.totalorder %s140, %s141
      %p153 = scmp.eq.s32.totalorder %s26, 1
      %p154 = por %p152, %p153
      %p156 = scmp.ne.s32.totalorder %s141, %s155
      %p157 = scmp.eq.s32.totalorder %s26, 0
      %p158 = por %p156, %p157
      %s159 = ssub.s32 %s20, %s27
      %p160 = scmp.eq.s32.totalorder %s159, 0
      %s162 = sadd.s32 %s161, 1
      %s163 = scalar_select %p160, %s161, %s162
      %p166 = pneg %p160
      %p167 = scmp.eq.s32.totalorder %s20, 1
      %p168 = por %p166, %p167
      %p169 = scmp.ne.s32.totalorder %s161, %s164
      %p170 = scmp.eq.s32.totalorder %s20, 0
      %p171 = por %p169, %p170
      %p172 = scmp.ne.s32.totalorder %s161, %s164
      %p173 = scmp.eq.s32.totalorder %s25, 1
      %p174 = por %p172, %p173
      %p175 = scmp.ne.s32.totalorder %s164, %s165
      %p176 = scmp.eq.s32.totalorder %s25, 0
      %p177 = por %p175, %p176
      %p178 = scmp.ne.s32.totalorder %s164, %s165
      %p179 = scmp.eq.s32.totalorder %s26, 1
      %p180 = por %p178, %p179
      %p182 = scmp.ne.s32.totalorder %s165, %s181
      %p183 = scmp.eq.s32.totalorder %s26, 0
      %p184 = por %p182, %p183
      %p185 = scmp.le.s32.totalorder 1, %s20
      %p186 = scmp.lt.s32.totalorder %s20, 3
      %p187 = pnand %p185, %p186
      %p188 = pneg %p187
      // Predicated region
      $region9: #{barf_forward_fm.1} parent=5 // pred_check
        _
      $region10: #{barf_forward_fm.1} parent=5 // pred_check_branch
        %190 = sbr.rel (%p187) target = $region12
      $region11: #{barf_forward_fm.1} parent=5 // pred_region
        %s191 = ssub.s32 %s20, 1
        // Predicated region
        $region13: #{barf_forward_fm.1} parent=11 // pred_check
          %p192 = pneg %p67
        $region14: #{barf_forward_fm.1} parent=11 // pred_check_branch
          %194 = sbr.rel (%p192) target = $region16
        $region15: #{barf_forward_fm.1} parent=11 // pred_region
          _
        $region16: #{barf_forward_fm.1} parent=11 // pred_fallthru
          _
        // Predicated region
        $region17: #{barf_forward_fm.1} parent=11 // pred_check
          %p195 = pneg %p88
        $region18: #{barf_forward_fm.1} parent=11 // pred_check_branch
          %197 = sbr.rel (%p195) target = $region20
        $region19: #{barf_forward_fm.1} parent=11 // pred_region
          _
        $region20: #{barf_forward_fm.1} parent=11 // pred_fallthru
          _
        // Predicated region
        $region21: #{barf_forward_fm.1} parent=11 // pred_check
          %p198 = pneg %p109
        $region22: #{barf_forward_fm.1} parent=11 // pred_check_branch
          %200 = sbr.rel (%p198) target = $region24
        $region23: #{barf_forward_fm.1} parent=11 // pred_region
          %s202 = ssub.s32 4096, 4096
          %203 = vsyncadd [#allocation6], %s202
          %s204 = sshll.u32 [#allocation5], 4
          %s205 = int_to_ptr.vmem [resolvable:$true] %s204
          %210 = dma.hbm_to_vmem [thread:$0]  %s3, 4096, %s205, [#allocation6], 128, 128, 8
        $region24: #{barf_forward_fm.1} parent=11 // pred_fallthru
          _
        // Predicated region
        $region25: #{barf_forward_fm.1} parent=11 // pred_check
          %p211 = pneg %p130
        $region26: #{barf_forward_fm.1} parent=11 // pred_check_branch
          %213 = sbr.rel (%p211) target = $region28
        $region27: #{barf_forward_fm.1} parent=11 // pred_region
          %s215 = ssub.s32 64, 64
          %216 = vsyncadd [#allocation6], %s215
          %s218 = sshll.u32 [#allocation7], 4
          %s219 = int_to_ptr.vmem [resolvable:$true] %s218
          %221 = dma.hbm_to_vmem [thread:$0]  %s4, 64, %s219, [#allocation6]
        $region28: #{barf_forward_fm.1} parent=11 // pred_fallthru
          _
        // Predicated region
        $region29: #{barf_forward_fm.1} parent=11 // pred_check
          %p222 = pneg %p151
        $region30: #{barf_forward_fm.1} parent=11 // pred_check_branch
          %224 = sbr.rel (%p222) target = $region32
        $region31: #{barf_forward_fm.1} parent=11 // pred_region
          %s226 = ssub.s32 64, 64
          %227 = vsyncadd [#allocation9], %s226
          %s229 = sshll.u32 [#allocation8], 4
          %s230 = int_to_ptr.vmem [resolvable:$true] %s229
          %232 = dma.hbm_to_vmem [thread:$0]  %s5, 64, %s230, [#allocation9]
        $region32: #{barf_forward_fm.1} parent=11 // pred_fallthru
          _
      $region12: #{barf_forward_fm.1} parent=5 // pred_fallthru
        _
      %p233 = scmp.lt.s32.totalorder %s20, 2
      // Predicated region
      $region33: #{barf_forward_fm.1} parent=5 // pred_check
        %p234 = pneg %p233
      $region34: #{barf_forward_fm.1} parent=5 // pred_check_branch
        %236 = sbr.rel (%p234) target = $region36
      $region35: #{barf_forward_fm.1} parent=5 // pred_region
        // Predicated region
        $region37: #{barf_forward_fm.1} parent=35 // pred_check
          %p237 = pneg %p40
        $region38: #{barf_forward_fm.1} parent=35 // pred_check_branch
          %239 = sbr.rel (%p237) target = $region40
        $region39: #{barf_forward_fm.1} parent=35 // pred_region
          %s240 = sand.u32 %s30, 1
          %s241 = scalar_lea.sflag [#allocation3], %s240
          %s242 = sand.u32 %s30, 1
          %s243 = smul.addr %s242, 4
          %s244 = scalar_lea.vmem [#allocation2], %s243
          %s246 = ssub.s32 64, 64
          %247 = vsyncadd %s241, %s246
          %s248 = smul.addr %s20, 64
          %s249 = scalar_lea.hbm %s0, %s248
          %s251 = sshll.u32 %s244, 4
          %s252 = int_to_ptr.vmem [resolvable:$true] %s251
          %254 = dma.hbm_to_vmem [thread:$0]  %s249, 64, %s252, %s241
        $region40: #{barf_forward_fm.1} parent=35 // pred_fallthru
          _
      $region36: #{barf_forward_fm.1} parent=5 // pred_fallthru
        _
      %p255 = scmp.le.s32.totalorder 1, %s20
      %p256 = scmp.lt.s32.totalorder %s20, 3
      %p257 = pnand %p255, %p256
      %p258 = pneg %p257
      // Predicated region
      $region41: #{barf_forward_fm.1} parent=5 // pred_check
        _
      $region42: #{barf_forward_fm.1} parent=5 // pred_check_branch
        %260 = sbr.rel (%p257) target = $region44
      $region43: #{barf_forward_fm.1} parent=5 // pred_region
        %s261 = ssub.s32 %s20, 1
        %s262 = sand.u32 %s33, 1
        %s263 = scalar_lea.sflag [#allocation3], %s262
        %s264 = sand.u32 %s33, 1
        %s265 = smul.addr %s264, 4
        %s266 = scalar_lea.vmem [#allocation2], %s265
        // Predicated region
        $region45: #{barf_forward_fm.1} parent=43 // pred_check
          %p267 = pneg %p46
        $region46: #{barf_forward_fm.1} parent=43 // pred_check_branch
          %269 = sbr.rel (%p267) target = $region48
        $region47: #{barf_forward_fm.1} parent=43 // pred_region
          %270 = dma.done %s263, 64
        $region48: #{barf_forward_fm.1} parent=43 // pred_fallthru
          _
        // Predicated region
        $region49: #{barf_forward_fm.1} parent=43 // pred_check
          %p271 = pneg %p109
        $region50: #{barf_forward_fm.1} parent=43 // pred_check_branch
          %273 = sbr.rel (%p271) target = $region52
        $region51: #{barf_forward_fm.1} parent=43 // pred_region
          %274 = dma.done [#allocation6], 4096
        $region52: #{barf_forward_fm.1} parent=43 // pred_fallthru
          _
        // Predicated region
        $region53: #{barf_forward_fm.1} parent=43 // pred_check
          %p275 = pneg %p130
        $region54: #{barf_forward_fm.1} parent=43 // pred_check_branch
          %277 = sbr.rel (%p275) target = $region56
        $region55: #{barf_forward_fm.1} parent=43 // pred_region
          %278 = dma.done [#allocation6], 64
        $region56: #{barf_forward_fm.1} parent=43 // pred_fallthru
          _
        // Predicated region
        $region57: #{barf_forward_fm.1} parent=43 // pred_check
          %p279 = pneg %p151
        $region58: #{barf_forward_fm.1} parent=43 // pred_check_branch
          %281 = sbr.rel (%p279) target = $region60
        $region59: #{barf_forward_fm.1} parent=43 // pred_region
          %282 = dma.done [#allocation9], 64
        $region60: #{barf_forward_fm.1} parent=43 // pred_fallthru
          _
        %s283 = sand.u32 %s33, 1
        %s284 = scalar_lea.sflag [#allocation3], %s283
        %s285 = sand.u32 %s33, 1
        %s286 = smul.addr %s285, 4
        %s287 = scalar_lea.vmem [#allocation2], %s286
        %p288 = pneg %p46
        %p289 = pneg %p43
        %p290 = pneg %p67
        %p291 = pneg %p64
        %p292 = pneg %p88
        %p293 = pneg %p85
        %p294 = pneg %p109
        %p295 = pneg %p106
        %p296 = pneg %p130
        %p297 = pneg %p127
        %p298 = pneg %p151
        %p299 = pneg %p148
        %p300 = pneg %p177
        %p301 = pneg %p174
        %s302 = sand.u32 %s164, 1
        %s303 = scalar_lea.sflag [#allocation4], %s302
        %s304 = sand.u32 %s164, 1
        %s305 = smul.addr %s304, 4
        %s306 = scalar_lea.vmem [#allocation10], %s305
        %v307 = vld [vmem:[%s266] sm:$0x7]
        %v308 = vld [vmem:[%s1] sm:$0xff]
        %v309 = vld [vmem:[%s1 + $0x8] sm:$0xff]
        %v310 = vld [vmem:[%s1 + $0x10] sm:$0xff]
        %v311 = vld [vmem:[%s1 + $0x18] sm:$0xff]
        %v312 = vld [vmem:[%s1 + $0x20] sm:$0xff]
        %v313 = vld [vmem:[%s1 + $0x28] sm:$0xff]
        %v314 = vld [vmem:[%s1 + $0x30] sm:$0xff]
        %v315 = vld [vmem:[%s1 + $0x38] sm:$0xff]
        %v316 = vld [vmem:[%s1 + $0x40] sm:$0xff]
        %v317 = vld [vmem:[%s1 + $0x48] sm:$0xff]
        %v318 = vld [vmem:[%s1 + $0x50] sm:$0xff]
        %v319 = vld [vmem:[%s1 + $0x58] sm:$0xff]
        %v320 = vld [vmem:[%s1 + $0x60] sm:$0xff]
        %v321 = vld [vmem:[%s1 + $0x68] sm:$0xff]
        %v322 = vld [vmem:[%s1 + $0x70] sm:$0xff]
        %v323 = vld [vmem:[%s1 + $0x78] sm:$0xff]
        %325 = vset.pattern.permute.xlu0 0
        %326 = vperm.xlu0 %325, %v308
        %v327 = vpop.permute.xlu0 %326
        %330 = vset.pattern.permute.xlu0 0
        %331 = vperm.xlu0 %330, %v309
        %v332 = vpop.permute.xlu0 %331
        %335 = vset.pattern.permute.xlu0 0
        %336 = vperm.xlu0 %335, %v310
        %v337 = vpop.permute.xlu0 %336
        %340 = vset.pattern.permute.xlu0 0
        %341 = vperm.xlu0 %340, %v311
        %v342 = vpop.permute.xlu0 %341
        %345 = vset.pattern.permute.xlu0 0
        %346 = vperm.xlu0 %345, %v312
        %v347 = vpop.permute.xlu0 %346
        %350 = vset.pattern.permute.xlu0 0
        %351 = vperm.xlu0 %350, %v313
        %v352 = vpop.permute.xlu0 %351
        %355 = vset.pattern.permute.xlu0 0
        %356 = vperm.xlu0 %355, %v314
        %v357 = vpop.permute.xlu0 %356
        %360 = vset.pattern.permute.xlu0 0
        %361 = vperm.xlu0 %360, %v315
        %v362 = vpop.permute.xlu0 %361
        %365 = vset.pattern.permute.xlu0 0
        %366 = vperm.xlu0 %365, %v316
        %v367 = vpop.permute.xlu0 %366
        %370 = vset.pattern.permute.xlu0 0
        %371 = vperm.xlu0 %370, %v317
        %v372 = vpop.permute.xlu0 %371
        %375 = vset.pattern.permute.xlu0 0
        %376 = vperm.xlu0 %375, %v318
        %v377 = vpop.permute.xlu0 %376
        %380 = vset.pattern.permute.xlu0 0
        %381 = vperm.xlu0 %380, %v319
        %v382 = vpop.permute.xlu0 %381
        %385 = vset.pattern.permute.xlu0 0
        %386 = vperm.xlu0 %385, %v320
        %v387 = vpop.permute.xlu0 %386
        %390 = vset.pattern.permute.xlu0 0
        %391 = vperm.xlu0 %390, %v321
        %v392 = vpop.permute.xlu0 %391
        %395 = vset.pattern.permute.xlu0 0
        %396 = vperm.xlu0 %395, %v322
        %v397 = vpop.permute.xlu0 %396
        %400 = vset.pattern.permute.xlu0 0
        %401 = vperm.xlu0 %400, %v323
        %v402 = vpop.permute.xlu0 %401
        %v404 = vlaneseq
        %v405 = vshrl.u32 %v404, 7
        %v406 = vsub.s32 0, %v405
        %v407 = vrot.slane %v307, %v406
        %v408 = vmul.f32 %v327, %v407
        %v409 = vmul.f32 %v332, %v407
        %v410 = vmul.f32 %v337, %v407
        %v411 = vmul.f32 %v342, %v407
        %v412 = vmul.f32 %v347, %v407
        %v413 = vmul.f32 %v352, %v407
        %v414 = vmul.f32 %v357, %v407
        %v415 = vmul.f32 %v362, %v407
        %v416 = vmul.f32 %v367, %v407
        %v417 = vmul.f32 %v372, %v407
        %v418 = vmul.f32 %v377, %v407
        %v419 = vmul.f32 %v382, %v407
        %v420 = vmul.f32 %v387, %v407
        %v421 = vmul.f32 %v392, %v407
        %v422 = vmul.f32 %v397, %v407
        %v423 = vmul.f32 %v402, %v407
        %424 = vset.pattern.permute.xlu0 1
        %425 = vperm.xlu0 %424, %v308
        %v426 = vpop.permute.xlu0 %425
        %428 = vset.pattern.permute.xlu0 1
        %429 = vperm.xlu0 %428, %v309
        %v430 = vpop.permute.xlu0 %429
        %432 = vset.pattern.permute.xlu0 1
        %433 = vperm.xlu0 %432, %v310
        %v434 = vpop.permute.xlu0 %433
        %436 = vset.pattern.permute.xlu0 1
        %437 = vperm.xlu0 %436, %v311
        %v438 = vpop.permute.xlu0 %437
        %440 = vset.pattern.permute.xlu0 1
        %441 = vperm.xlu0 %440, %v312
        %v442 = vpop.permute.xlu0 %441
        %444 = vset.pattern.permute.xlu0 1
        %445 = vperm.xlu0 %444, %v313
        %v446 = vpop.permute.xlu0 %445
        %448 = vset.pattern.permute.xlu0 1
        %449 = vperm.xlu0 %448, %v314
        %v450 = vpop.permute.xlu0 %449
        %452 = vset.pattern.permute.xlu0 1
        %453 = vperm.xlu0 %452, %v315
        %v454 = vpop.permute.xlu0 %453
        %456 = vset.pattern.permute.xlu0 1
        %457 = vperm.xlu0 %456, %v316
        %v458 = vpop.permute.xlu0 %457
        %460 = vset.pattern.permute.xlu0 1
        %461 = vperm.xlu0 %460, %v317
        %v462 = vpop.permute.xlu0 %461
        %464 = vset.pattern.permute.xlu0 1
        %465 = vperm.xlu0 %464, %v318
        %v466 = vpop.permute.xlu0 %465
        %468 = vset.pattern.permute.xlu0 1
        %469 = vperm.xlu0 %468, %v319
        %v470 = vpop.permute.xlu0 %469
        %472 = vset.pattern.permute.xlu0 1
        %473 = vperm.xlu0 %472, %v320
        %v474 = vpop.permute.xlu0 %473
        %476 = vset.pattern.permute.xlu0 1
        %477 = vperm.xlu0 %476, %v321
        %v478 = vpop.permute.xlu0 %477
        %480 = vset.pattern.permute.xlu0 1
        %481 = vperm.xlu0 %480, %v322
        %v482 = vpop.permute.xlu0 %481
        %484 = vset.pattern.permute.xlu0 1
        %485 = vperm.xlu0 %484, %v323
        %v486 = vpop.permute.xlu0 %485
        %v488 = vlaneseq
        %v489 = vshrl.u32 %v488, 7
        %v490 = vsub.s32 1, %v489
        %v491 = vrot.slane %v307, %v490
        %v492 = vmul.f32 %v426, %v491
        %v493 = vmul.f32 %v430, %v491
        %v494 = vmul.f32 %v434, %v491
        %v495 = vmul.f32 %v438, %v491
        %v496 = vmul.f32 %v442, %v491
        %v497 = vmul.f32 %v446, %v491
        %v498 = vmul.f32 %v450, %v491
        %v499 = vmul.f32 %v454, %v491
        %v500 = vmul.f32 %v458, %v491
        %v501 = vmul.f32 %v462, %v491
        %v502 = vmul.f32 %v466, %v491
        %v503 = vmul.f32 %v470, %v491
        %v504 = vmul.f32 %v474, %v491
        %v505 = vmul.f32 %v478, %v491
        %v506 = vmul.f32 %v482, %v491
        %v507 = vmul.f32 %v486, %v491
        %v508 = vadd.f32 %v408, %v492
        %v509 = vadd.f32 %v409, %v493
        %v510 = vadd.f32 %v410, %v494
        %v511 = vadd.f32 %v411, %v495
        %v512 = vadd.f32 %v412, %v496
        %v513 = vadd.f32 %v413, %v497
        %v514 = vadd.f32 %v414, %v498
        %v515 = vadd.f32 %v415, %v499
        %v516 = vadd.f32 %v416, %v500
        %v517 = vadd.f32 %v417, %v501
        %v518 = vadd.f32 %v418, %v502
        %v519 = vadd.f32 %v419, %v503
        %v520 = vadd.f32 %v420, %v504
        %v521 = vadd.f32 %v421, %v505
        %v522 = vadd.f32 %v422, %v506
        %v523 = vadd.f32 %v423, %v507
        %524 = vset.pattern.permute.xlu0 2
        %525 = vperm.xlu0 %524, %v308
        %v526 = vpop.permute.xlu0 %525
        %528 = vset.pattern.permute.xlu0 2
        %529 = vperm.xlu0 %528, %v309
        %v530 = vpop.permute.xlu0 %529
        %532 = vset.pattern.permute.xlu0 2
        %533 = vperm.xlu0 %532, %v310
        %v534 = vpop.permute.xlu0 %533
        %536 = vset.pattern.permute.xlu0 2
        %537 = vperm.xlu0 %536, %v311
        %v538 = vpop.permute.xlu0 %537
        %540 = vset.pattern.permute.xlu0 2
        %541 = vperm.xlu0 %540, %v312
        %v542 = vpop.permute.xlu0 %541
        %544 = vset.pattern.permute.xlu0 2
        %545 = vperm.xlu0 %544, %v313
        %v546 = vpop.permute.xlu0 %545
        %548 = vset.pattern.permute.xlu0 2
        %549 = vperm.xlu0 %548, %v314
        %v550 = vpop.permute.xlu0 %549
        %552 = vset.pattern.permute.xlu0 2
        %553 = vperm.xlu0 %552, %v315
        %v554 = vpop.permute.xlu0 %553
        %556 = vset.pattern.permute.xlu0 2
        %557 = vperm.xlu0 %556, %v316
        %v558 = vpop.permute.xlu0 %557
        %560 = vset.pattern.permute.xlu0 2
        %561 = vperm.xlu0 %560, %v317
        %v562 = vpop.permute.xlu0 %561
        %564 = vset.pattern.permute.xlu0 2
        %565 = vperm.xlu0 %564, %v318
        %v566 = vpop.permute.xlu0 %565
        %568 = vset.pattern.permute.xlu0 2
        %569 = vperm.xlu0 %568, %v319
        %v570 = vpop.permute.xlu0 %569
        %572 = vset.pattern.permute.xlu0 2
        %573 = vperm.xlu0 %572, %v320
        %v574 = vpop.permute.xlu0 %573
        %576 = vset.pattern.permute.xlu0 2
        %577 = vperm.xlu0 %576, %v321
        %v578 = vpop.permute.xlu0 %577
        %580 = vset.pattern.permute.xlu0 2
        %581 = vperm.xlu0 %580, %v322
        %v582 = vpop.permute.xlu0 %581
        %584 = vset.pattern.permute.xlu0 2
        %585 = vperm.xlu0 %584, %v323
        %v586 = vpop.permute.xlu0 %585
        %v588 = vlaneseq
        %v589 = vshrl.u32 %v588, 7
        %v590 = vsub.s32 2, %v589
        %v591 = vrot.slane %v307, %v590
        %v592 = vmul.f32 %v526, %v591
        %v593 = vmul.f32 %v530, %v591
        %v594 = vmul.f32 %v534, %v591
        %v595 = vmul.f32 %v538, %v591
        %v596 = vmul.f32 %v542, %v591
        %v597 = vmul.f32 %v546, %v591
        %v598 = vmul.f32 %v550, %v591
        %v599 = vmul.f32 %v554, %v591
        %v600 = vmul.f32 %v558, %v591
        %v601 = vmul.f32 %v562, %v591
        %v602 = vmul.f32 %v566, %v591
        %v603 = vmul.f32 %v570, %v591
        %v604 = vmul.f32 %v574, %v591
        %v605 = vmul.f32 %v578, %v591
        %v606 = vmul.f32 %v582, %v591
        %v607 = vmul.f32 %v586, %v591
        %v608 = vadd.f32 %v508, %v592
        %v609 = vadd.f32 %v509, %v593
        %v610 = vadd.f32 %v510, %v594
        %v611 = vadd.f32 %v511, %v595
        %v612 = vadd.f32 %v512, %v596
        %v613 = vadd.f32 %v513, %v597
        %v614 = vadd.f32 %v514, %v598
        %v615 = vadd.f32 %v515, %v599
        %v616 = vadd.f32 %v516, %v600
        %v617 = vadd.f32 %v517, %v601
        %v618 = vadd.f32 %v518, %v602
        %v619 = vadd.f32 %v519, %v603
        %v620 = vadd.f32 %v520, %v604
        %v621 = vadd.f32 %v521, %v605
        %v622 = vadd.f32 %v522, %v606
        %v623 = vadd.f32 %v523, %v607
        %624 = vset.pattern.permute.xlu0 3
        %625 = vperm.xlu0 %624, %v308
        %v626 = vpop.permute.xlu0 %625
        %628 = vset.pattern.permute.xlu0 3
        %629 = vperm.xlu0 %628, %v309
        %v630 = vpop.permute.xlu0 %629
        %632 = vset.pattern.permute.xlu0 3
        %633 = vperm.xlu0 %632, %v310
        %v634 = vpop.permute.xlu0 %633
        %636 = vset.pattern.permute.xlu0 3
        %637 = vperm.xlu0 %636, %v311
        %v638 = vpop.permute.xlu0 %637
        %640 = vset.pattern.permute.xlu0 3
        %641 = vperm.xlu0 %640, %v312
        %v642 = vpop.permute.xlu0 %641
        %644 = vset.pattern.permute.xlu0 3
        %645 = vperm.xlu0 %644, %v313
        %v646 = vpop.permute.xlu0 %645
        %648 = vset.pattern.permute.xlu0 3
        %649 = vperm.xlu0 %648, %v314
        %v650 = vpop.permute.xlu0 %649
        %652 = vset.pattern.permute.xlu0 3
        %653 = vperm.xlu0 %652, %v315
        %v654 = vpop.permute.xlu0 %653
        %656 = vset.pattern.permute.xlu0 3
        %657 = vperm.xlu0 %656, %v316
        %v658 = vpop.permute.xlu0 %657
        %660 = vset.pattern.permute.xlu0 3
        %661 = vperm.xlu0 %660, %v317
        %v662 = vpop.permute.xlu0 %661
        %664 = vset.pattern.permute.xlu0 3
        %665 = vperm.xlu0 %664, %v318
        %v666 = vpop.permute.xlu0 %665
        %668 = vset.pattern.permute.xlu0 3
        %669 = vperm.xlu0 %668, %v319
        %v670 = vpop.permute.xlu0 %669
        %672 = vset.pattern.permute.xlu0 3
        %673 = vperm.xlu0 %672, %v320
        %v674 = vpop.permute.xlu0 %673
        %676 = vset.pattern.permute.xlu0 3
        %677 = vperm.xlu0 %676, %v321
        %v678 = vpop.permute.xlu0 %677
        %680 = vset.pattern.permute.xlu0 3
        %681 = vperm.xlu0 %680, %v322
        %v682 = vpop.permute.xlu0 %681
        %684 = vset.pattern.permute.xlu0 3
        %685 = vperm.xlu0 %684, %v323
        %v686 = vpop.permute.xlu0 %685
        %v688 = vadd.f32 %v608, %v626
        %v689 = vadd.f32 %v609, %v630
        %v690 = vadd.f32 %v610, %v634
        %v691 = vadd.f32 %v611, %v638
        %v692 = vadd.f32 %v612, %v642
        %v693 = vadd.f32 %v613, %v646
        %v694 = vadd.f32 %v614, %v650
        %v695 = vadd.f32 %v615, %v654
        %v696 = vadd.f32 %v616, %v658
        %v697 = vadd.f32 %v617, %v662
        %v698 = vadd.f32 %v618, %v666
        %v699 = vadd.f32 %v619, %v670
        %v700 = vadd.f32 %v620, %v674
        %v701 = vadd.f32 %v621, %v678
        %v702 = vadd.f32 %v622, %v682
        %v703 = vadd.f32 %v623, %v686
        %v704 = vmax.f32 %v688, 0.0
        %v705 = vmax.f32 %v689, 0.0
        %v706 = vmax.f32 %v690, 0.0
        %v707 = vmax.f32 %v691, 0.0
        %v708 = vmax.f32 %v692, 0.0
        %v709 = vmax.f32 %v693, 0.0
        %v710 = vmax.f32 %v694, 0.0
        %v711 = vmax.f32 %v695, 0.0
        %v712 = vmax.f32 %v696, 0.0
        %v713 = vmax.f32 %v697, 0.0
        %v714 = vmax.f32 %v698, 0.0
        %v715 = vmax.f32 %v699, 0.0
        %v716 = vmax.f32 %v700, 0.0
        %v717 = vmax.f32 %v701, 0.0
        %v718 = vmax.f32 %v702, 0.0
        %v719 = vmax.f32 %v703, 0.0
        %v720 = vld [vmem:[%s2] sm:$0xff]
        %v721 = vld [vmem:[%s2 + $0x8] sm:$0xff]
        %v722 = vld [vmem:[%s2 + $0x10] sm:$0xff]
        %v723 = vld [vmem:[%s2 + $0x18] sm:$0xff]
        %v724 = vld [vmem:[%s2 + $0x20] sm:$0xff]
        %v725 = vld [vmem:[%s2 + $0x28] sm:$0xff]
        %v726 = vld [vmem:[%s2 + $0x30] sm:$0xff]
        %v727 = vld [vmem:[%s2 + $0x38] sm:$0xff]
        %v728 = vld [vmem:[%s2 + $0x40] sm:$0xff]
        %v729 = vld [vmem:[%s2 + $0x48] sm:$0xff]
        %v730 = vld [vmem:[%s2 + $0x50] sm:$0xff]
        %v731 = vld [vmem:[%s2 + $0x58] sm:$0xff]
        %v732 = vld [vmem:[%s2 + $0x60] sm:$0xff]
        %v733 = vld [vmem:[%s2 + $0x68] sm:$0xff]
        %v734 = vld [vmem:[%s2 + $0x70] sm:$0xff]
        %v735 = vld [vmem:[%s2 + $0x78] sm:$0xff]
        %v736 = vld [vmem:[#allocation5] sm:$0xff]
        %v737 = vld [vmem:[#allocation5 + $0x8] sm:$0xff]
        %v738 = vld [vmem:[#allocation5 + $0x10] sm:$0xff]
        %v739 = vld [vmem:[#allocation5 + $0x18] sm:$0xff]
        %v740 = vld [vmem:[#allocation5 + $0x20] sm:$0xff]
        %v741 = vld [vmem:[#allocation5 + $0x28] sm:$0xff]
        %v742 = vld [vmem:[#allocation5 + $0x30] sm:$0xff]
        %v743 = vld [vmem:[#allocation5 + $0x38] sm:$0xff]
        %v744 = vld [vmem:[#allocation5 + $0x40] sm:$0xff]
        %v745 = vld [vmem:[#allocation5 + $0x48] sm:$0xff]
        %v746 = vld [vmem:[#allocation5 + $0x50] sm:$0xff]
        %v747 = vld [vmem:[#allocation5 + $0x58] sm:$0xff]
        %v748 = vld [vmem:[#allocation5 + $0x60] sm:$0xff]
        %v749 = vld [vmem:[#allocation5 + $0x68] sm:$0xff]
        %v750 = vld [vmem:[#allocation5 + $0x70] sm:$0xff]
        %v751 = vld [vmem:[#allocation5 + $0x78] sm:$0xff]
        %752 = vmatprep.subr.mxu0 0.0
        %753 = vmatpush1.msra.mxu0 %v719
        %754 = vmatprep.subr.mxu0 0.0
        %755 = vmatpush1.msra.mxu0 %v718
        %756 = vmatprep.subr.mxu0 0.0
        %757 = vmatpush1.msra.mxu0 %v717
        %758 = vmatprep.subr.mxu0 0.0
        %759 = vmatpush1.msra.mxu0 %v716
        %760 = vmatprep.subr.mxu0 0.0
        %761 = vmatpush1.msra.mxu0 %v715
        %762 = vmatprep.subr.mxu0 0.0
        %763 = vmatpush1.msra.mxu0 %v714
        %764 = vmatprep.subr.mxu0 0.0
        %765 = vmatpush1.msra.mxu0 %v713
        %766 = vmatprep.subr.mxu0 0.0
        %767 = vmatpush1.msra.mxu0 %v712
        %768 = vmatprep.subr.mxu0 0.0
        %769 = vmatpush1.msra.mxu0 %v711
        %770 = vmatprep.subr.mxu0 0.0
        %771 = vmatpush1.msra.mxu0 %v710
        %772 = vmatprep.subr.mxu0 0.0
        %773 = vmatpush1.msra.mxu0 %v709
        %774 = vmatprep.subr.mxu0 0.0
        %775 = vmatpush1.msra.mxu0 %v708
        %776 = vmatprep.subr.mxu0 0.0
        %777 = vmatpush1.msra.mxu0 %v707
        %778 = vmatprep.subr.mxu0 0.0
        %779 = vmatpush1.msra.mxu0 %v706
        %780 = vmatprep.subr.mxu0 0.0
        %781 = vmatpush1.msra.mxu0 %v705
        %782 = vmatprep.subr.mxu0 0.0
        %783 = vmatpush1.msra.mxu0 %v704
        %784 = vmatprep.subr.mxu0 0.0
        %785 = vmatpush2.msra.mxu0 0.0
        %786 = vmatprep.subr.mxu0 0.0
        %787 = vmatpush2.msra.mxu0 0.0
        %788 = vmatprep.subr.mxu0 0.0
        %789 = vmatpush2.msra.mxu0 0.0
        %790 = vmatprep.subr.mxu0 0.0
        %791 = vmatpush2.msra.mxu0 0.0
        %792 = vmatprep.subr.mxu0 0.0
        %793 = vmatpush2.msra.mxu0 0.0
        %794 = vmatprep.subr.mxu0 0.0
        %795 = vmatpush2.msra.mxu0 0.0
        %796 = vmatprep.subr.mxu0 0.0
        %797 = vmatpush2.msra.mxu0 0.0
        %798 = vmatprep.subr.mxu0 0.0
        %799 = vmatpush2.msra.mxu0 0.0
        %800 = vmatprep.subr.mxu0 0.0
        %801 = vmatpush2.msra.mxu0 0.0
        %802 = vmatprep.subr.mxu0 0.0
        %803 = vmatpush2.msra.mxu0 0.0
        %804 = vmatprep.subr.mxu0 0.0
        %805 = vmatpush2.msra.mxu0 0.0
        %806 = vmatprep.subr.mxu0 0.0
        %807 = vmatpush2.msra.mxu0 0.0
        %808 = vmatprep.subr.mxu0 0.0
        %809 = vmatpush2.msra.mxu0 0.0
        %810 = vmatprep.subr.mxu0 0.0
        %811 = vmatpush2.msra.mxu0 0.0
        %812 = vmatprep.subr.mxu0 0.0
        %813 = vmatpush2.msra.mxu0 0.0
        %814 = vmatprep.subr.mxu0 0.0
        %815 = vmatpush2.msra.mxu0 0.0
        %816 = vmatprep.mubr.f32.mxu0 0.0
        %817 = vmatmul.mubr.f32.gmra.mxu0 %v720
        %v818 = vpop.f32.mrf.mxu0
        %v819 = vadd.f32 %v736, %v818
        %v820 = vpop.f32.mrf.mxu0
        %821 = vmatprep.mubr.f32.mxu0 0.0
        %822 = vmatmul.mubr.f32.gmra.mxu0 %v721
        %v823 = vpop.f32.mrf.mxu0
        %v824 = vadd.f32 %v737, %v823
        %v825 = vpop.f32.mrf.mxu0
        %826 = vmatprep.mubr.f32.mxu0 0.0
        %827 = vmatmul.mubr.f32.gmra.mxu0 %v722
        %v828 = vpop.f32.mrf.mxu0
        %v829 = vadd.f32 %v738, %v828
        %v830 = vpop.f32.mrf.mxu0
        %831 = vmatprep.mubr.f32.mxu0 0.0
        %832 = vmatmul.mubr.f32.gmra.mxu0 %v723
        %v833 = vpop.f32.mrf.mxu0
        %v834 = vadd.f32 %v739, %v833
        %v835 = vpop.f32.mrf.mxu0
        %836 = vmatprep.mubr.f32.mxu0 0.0
        %837 = vmatmul.mubr.f32.gmra.mxu0 %v724
        %v838 = vpop.f32.mrf.mxu0
        %v839 = vadd.f32 %v740, %v838
        %v840 = vpop.f32.mrf.mxu0
        %841 = vmatprep.mubr.f32.mxu0 0.0
        %842 = vmatmul.mubr.f32.gmra.mxu0 %v725
        %v843 = vpop.f32.mrf.mxu0
        %v844 = vadd.f32 %v741, %v843
        %v845 = vpop.f32.mrf.mxu0
        %846 = vmatprep.mubr.f32.mxu0 0.0
        %847 = vmatmul.mubr.f32.gmra.mxu0 %v726
        %v848 = vpop.f32.mrf.mxu0
        %v849 = vadd.f32 %v742, %v848
        %v850 = vpop.f32.mrf.mxu0
        %851 = vmatprep.mubr.f32.mxu0 0.0
        %852 = vmatmul.mubr.f32.gmra.mxu0 %v727
        %v853 = vpop.f32.mrf.mxu0
        %v854 = vadd.f32 %v743, %v853
        %v855 = vpop.f32.mrf.mxu0
        %856 = vmatprep.mubr.f32.mxu0 0.0
        %857 = vmatmul.mubr.f32.gmra.mxu0 %v728
        %v858 = vpop.f32.mrf.mxu0
        %v859 = vadd.f32 %v744, %v858
        %v860 = vpop.f32.mrf.mxu0
        %861 = vmatprep.mubr.f32.mxu0 0.0
        %862 = vmatmul.mubr.f32.gmra.mxu0 %v729
        %v863 = vpop.f32.mrf.mxu0
        %v864 = vadd.f32 %v745, %v863
        %v865 = vpop.f32.mrf.mxu0
        %866 = vmatprep.mubr.f32.mxu0 0.0
        %867 = vmatmul.mubr.f32.gmra.mxu0 %v730
        %v868 = vpop.f32.mrf.mxu0
        %v869 = vadd.f32 %v746, %v868
        %v870 = vpop.f32.mrf.mxu0
        %871 = vmatprep.mubr.f32.mxu0 0.0
        %872 = vmatmul.mubr.f32.gmra.mxu0 %v731
        %v873 = vpop.f32.mrf.mxu0
        %v874 = vadd.f32 %v747, %v873
        %v875 = vpop.f32.mrf.mxu0
        %876 = vmatprep.mubr.f32.mxu0 0.0
        %877 = vmatmul.mubr.f32.gmra.mxu0 %v732
        %v878 = vpop.f32.mrf.mxu0
        %v879 = vadd.f32 %v748, %v878
        %v880 = vpop.f32.mrf.mxu0
        %881 = vmatprep.mubr.f32.mxu0 0.0
        %882 = vmatmul.mubr.f32.gmra.mxu0 %v733
        %v883 = vpop.f32.mrf.mxu0
        %v884 = vadd.f32 %v749, %v883
        %v885 = vpop.f32.mrf.mxu0
        %886 = vmatprep.mubr.f32.mxu0 0.0
        %887 = vmatmul.mubr.f32.gmra.mxu0 %v734
        %v888 = vpop.f32.mrf.mxu0
        %v889 = vadd.f32 %v750, %v888
        %v890 = vpop.f32.mrf.mxu0
        %891 = vmatprep.mubr.f32.mxu0 0.0
        %892 = vmatmul.mubr.f32.gmra.mxu0 %v735
        %v893 = vpop.f32.mrf.mxu0
        %v894 = vadd.f32 %v751, %v893
        %v895 = vpop.f32.mrf.mxu0
        %896 = vdwg.mxu0
        %v897 = vmax.f32 %v819, 0.0
        %v898 = vmax.f32 %v824, 0.0
        %v899 = vmax.f32 %v829, 0.0
        %v900 = vmax.f32 %v834, 0.0
        %v901 = vmax.f32 %v839, 0.0
        %v902 = vmax.f32 %v844, 0.0
        %v903 = vmax.f32 %v849, 0.0
        %v904 = vmax.f32 %v854, 0.0
        %v905 = vmax.f32 %v859, 0.0
        %v906 = vmax.f32 %v864, 0.0
        %v907 = vmax.f32 %v869, 0.0
        %v908 = vmax.f32 %v874, 0.0
        %v909 = vmax.f32 %v879, 0.0
        %v910 = vmax.f32 %v884, 0.0
        %v911 = vmax.f32 %v889, 0.0
        %v912 = vmax.f32 %v894, 0.0
        %s913 = scalar_lea.vmem %s2, 128
        %v914 = vld [vmem:[%s913] sm:$0xff]
        %v915 = vld [vmem:[%s913 + $0x8] sm:$0xff]
        %v916 = vld [vmem:[%s913 + $0x10] sm:$0xff]
        %v917 = vld [vmem:[%s913 + $0x18] sm:$0xff]
        %v918 = vld [vmem:[%s913 + $0x20] sm:$0xff]
        %v919 = vld [vmem:[%s913 + $0x28] sm:$0xff]
        %v920 = vld [vmem:[%s913 + $0x30] sm:$0xff]
        %v921 = vld [vmem:[%s913 + $0x38] sm:$0xff]
        %v922 = vld [vmem:[%s913 + $0x40] sm:$0xff]
        %v923 = vld [vmem:[%s913 + $0x48] sm:$0xff]
        %v924 = vld [vmem:[%s913 + $0x50] sm:$0xff]
        %v925 = vld [vmem:[%s913 + $0x58] sm:$0xff]
        %v926 = vld [vmem:[%s913 + $0x60] sm:$0xff]
        %v927 = vld [vmem:[%s913 + $0x68] sm:$0xff]
        %v928 = vld [vmem:[%s913 + $0x70] sm:$0xff]
        %v929 = vld [vmem:[%s913 + $0x78] sm:$0xff]
        %s930 = scalar_lea.vmem [#allocation5], 128
        %v931 = vld [vmem:[%s930] sm:$0xff]
        %v932 = vld [vmem:[%s930 + $0x8] sm:$0xff]
        %v933 = vld [vmem:[%s930 + $0x10] sm:$0xff]
        %v934 = vld [vmem:[%s930 + $0x18] sm:$0xff]
        %v935 = vld [vmem:[%s930 + $0x20] sm:$0xff]
        %v936 = vld [vmem:[%s930 + $0x28] sm:$0xff]
        %v937 = vld [vmem:[%s930 + $0x30] sm:$0xff]
        %v938 = vld [vmem:[%s930 + $0x38] sm:$0xff]
        %v939 = vld [vmem:[%s930 + $0x40] sm:$0xff]
        %v940 = vld [vmem:[%s930 + $0x48] sm:$0xff]
        %v941 = vld [vmem:[%s930 + $0x50] sm:$0xff]
        %v942 = vld [vmem:[%s930 + $0x58] sm:$0xff]
        %v943 = vld [vmem:[%s930 + $0x60] sm:$0xff]
        %v944 = vld [vmem:[%s930 + $0x68] sm:$0xff]
        %v945 = vld [vmem:[%s930 + $0x70] sm:$0xff]
        %v946 = vld [vmem:[%s930 + $0x78] sm:$0xff]
        %947 = vmatprep.subr.mxu0 0.0
        %948 = vmatpush1.msra.mxu0 %v912
        %949 = vmatprep.subr.mxu0 0.0
        %950 = vmatpush1.msra.mxu0 %v911
        %951 = vmatprep.subr.mxu0 0.0
        %952 = vmatpush1.msra.mxu0 %v910
        %953 = vmatprep.subr.mxu0 0.0
        %954 = vmatpush1.msra.mxu0 %v909
        %955 = vmatprep.subr.mxu0 0.0
        %956 = vmatpush1.msra.mxu0 %v908
        %957 = vmatprep.subr.mxu0 0.0
        %958 = vmatpush1.msra.mxu0 %v907
        %959 = vmatprep.subr.mxu0 0.0
        %960 = vmatpush1.msra.mxu0 %v906
        %961 = vmatprep.subr.mxu0 0.0
        %962 = vmatpush1.msra.mxu0 %v905
        %963 = vmatprep.subr.mxu0 0.0
        %964 = vmatpush1.msra.mxu0 %v904
        %965 = vmatprep.subr.mxu0 0.0
        %966 = vmatpush1.msra.mxu0 %v903
        %967 = vmatprep.subr.mxu0 0.0
        %968 = vmatpush1.msra.mxu0 %v902
        %969 = vmatprep.subr.mxu0 0.0
        %970 = vmatpush1.msra.mxu0 %v901
        %971 = vmatprep.subr.mxu0 0.0
        %972 = vmatpush1.msra.mxu0 %v900
        %973 = vmatprep.subr.mxu0 0.0
        %974 = vmatpush1.msra.mxu0 %v899
        %975 = vmatprep.subr.mxu0 0.0
        %976 = vmatpush1.msra.mxu0 %v898
        %977 = vmatprep.subr.mxu0 0.0
        %978 = vmatpush1.msra.mxu0 %v897
        %979 = vmatprep.subr.mxu0 0.0
        %980 = vmatpush2.msra.mxu0 0.0
        %981 = vmatprep.subr.mxu0 0.0
        %982 = vmatpush2.msra.mxu0 0.0
        %983 = vmatprep.subr.mxu0 0.0
        %984 = vmatpush2.msra.mxu0 0.0
        %985 = vmatprep.subr.mxu0 0.0
        %986 = vmatpush2.msra.mxu0 0.0
        %987 = vmatprep.subr.mxu0 0.0
        %988 = vmatpush2.msra.mxu0 0.0
        %989 = vmatprep.subr.mxu0 0.0
        %990 = vmatpush2.msra.mxu0 0.0
        %991 = vmatprep.subr.mxu0 0.0
        %992 = vmatpush2.msra.mxu0 0.0
        %993 = vmatprep.subr.mxu0 0.0
        %994 = vmatpush2.msra.mxu0 0.0
        %995 = vmatprep.subr.mxu0 0.0
        %996 = vmatpush2.msra.mxu0 0.0
        %997 = vmatprep.subr.mxu0 0.0
        %998 = vmatpush2.msra.mxu0 0.0
        %999 = vmatprep.subr.mxu0 0.0
        %1000 = vmatpush2.msra.mxu0 0.0
        %1001 = vmatprep.subr.mxu0 0.0
        %1002 = vmatpush2.msra.mxu0 0.0
        %1003 = vmatprep.subr.mxu0 0.0
        %1004 = vmatpush2.msra.mxu0 0.0
        %1005 = vmatprep.subr.mxu0 0.0
        %1006 = vmatpush2.msra.mxu0 0.0
        %1007 = vmatprep.subr.mxu0 0.0
        %1008 = vmatpush2.msra.mxu0 0.0
        %1009 = vmatprep.subr.mxu0 0.0
        %1010 = vmatpush2.msra.mxu0 0.0
        %1011 = vmatprep.mubr.f32.mxu0 0.0
        %1012 = vmatmul.mubr.f32.gmra.mxu0 %v914
        %v1013 = vpop.f32.mrf.mxu0
        %v1014 = vadd.f32 %v931, %v1013
        %v1015 = vpop.f32.mrf.mxu0
        %1016 = vmatprep.mubr.f32.mxu0 0.0
        %1017 = vmatmul.mubr.f32.gmra.mxu0 %v915
        %v1018 = vpop.f32.mrf.mxu0
        %v1019 = vadd.f32 %v932, %v1018
        %v1020 = vpop.f32.mrf.mxu0
        %1021 = vmatprep.mubr.f32.mxu0 0.0
        %1022 = vmatmul.mubr.f32.gmra.mxu0 %v916
        %v1023 = vpop.f32.mrf.mxu0
        %v1024 = vadd.f32 %v933, %v1023
        %v1025 = vpop.f32.mrf.mxu0
        %1026 = vmatprep.mubr.f32.mxu0 0.0
        %1027 = vmatmul.mubr.f32.gmra.mxu0 %v917
        %v1028 = vpop.f32.mrf.mxu0
        %v1029 = vadd.f32 %v934, %v1028
        %v1030 = vpop.f32.mrf.mxu0
        %1031 = vmatprep.mubr.f32.mxu0 0.0
        %1032 = vmatmul.mubr.f32.gmra.mxu0 %v918
        %v1033 = vpop.f32.mrf.mxu0
        %v1034 = vadd.f32 %v935, %v1033
        %v1035 = vpop.f32.mrf.mxu0
        %1036 = vmatprep.mubr.f32.mxu0 0.0
        %1037 = vmatmul.mubr.f32.gmra.mxu0 %v919
        %v1038 = vpop.f32.mrf.mxu0
        %v1039 = vadd.f32 %v936, %v1038
        %v1040 = vpop.f32.mrf.mxu0
        %1041 = vmatprep.mubr.f32.mxu0 0.0
        %1042 = vmatmul.mubr.f32.gmra.mxu0 %v920
        %v1043 = vpop.f32.mrf.mxu0
        %v1044 = vadd.f32 %v937, %v1043
        %v1045 = vpop.f32.mrf.mxu0
        %1046 = vmatprep.mubr.f32.mxu0 0.0
        %1047 = vmatmul.mubr.f32.gmra.mxu0 %v921
        %v1048 = vpop.f32.mrf.mxu0
        %v1049 = vadd.f32 %v938, %v1048
        %v1050 = vpop.f32.mrf.mxu0
        %1051 = vmatprep.mubr.f32.mxu0 0.0
        %1052 = vmatmul.mubr.f32.gmra.mxu0 %v922
        %v1053 = vpop.f32.mrf.mxu0
        %v1054 = vadd.f32 %v939, %v1053
        %v1055 = vpop.f32.mrf.mxu0
        %1056 = vmatprep.mubr.f32.mxu0 0.0
        %1057 = vmatmul.mubr.f32.gmra.mxu0 %v923
        %v1058 = vpop.f32.mrf.mxu0
        %v1059 = vadd.f32 %v940, %v1058
        %v1060 = vpop.f32.mrf.mxu0
        %1061 = vmatprep.mubr.f32.mxu0 0.0
        %1062 = vmatmul.mubr.f32.gmra.mxu0 %v924
        %v1063 = vpop.f32.mrf.mxu0
        %v1064 = vadd.f32 %v941, %v1063
        %v1065 = vpop.f32.mrf.mxu0
        %1066 = vmatprep.mubr.f32.mxu0 0.0
        %1067 = vmatmul.mubr.f32.gmra.mxu0 %v925
        %v1068 = vpop.f32.mrf.mxu0
        %v1069 = vadd.f32 %v942, %v1068
        %v1070 = vpop.f32.mrf.mxu0
        %1071 = vmatprep.mubr.f32.mxu0 0.0
        %1072 = vmatmul.mubr.f32.gmra.mxu0 %v926
        %v1073 = vpop.f32.mrf.mxu0
        %v1074 = vadd.f32 %v943, %v1073
        %v1075 = vpop.f32.mrf.mxu0
        %1076 = vmatprep.mubr.f32.mxu0 0.0
        %1077 = vmatmul.mubr.f32.gmra.mxu0 %v927
        %v1078 = vpop.f32.mrf.mxu0
        %v1079 = vadd.f32 %v944, %v1078
        %v1080 = vpop.f32.mrf.mxu0
        %1081 = vmatprep.mubr.f32.mxu0 0.0
        %1082 = vmatmul.mubr.f32.gmra.mxu0 %v928
        %v1083 = vpop.f32.mrf.mxu0
        %v1084 = vadd.f32 %v945, %v1083
        %v1085 = vpop.f32.mrf.mxu0
        %1086 = vmatprep.mubr.f32.mxu0 0.0
        %1087 = vmatmul.mubr.f32.gmra.mxu0 %v929
        %v1088 = vpop.f32.mrf.mxu0
        %v1089 = vadd.f32 %v946, %v1088
        %v1090 = vpop.f32.mrf.mxu0
        %1091 = vdwg.mxu0
        %v1092 = vmax.f32 %v1014, 0.0
        %v1093 = vmax.f32 %v1019, 0.0
        %v1094 = vmax.f32 %v1024, 0.0
        %v1095 = vmax.f32 %v1029, 0.0
        %v1096 = vmax.f32 %v1034, 0.0
        %v1097 = vmax.f32 %v1039, 0.0
        %v1098 = vmax.f32 %v1044, 0.0
        %v1099 = vmax.f32 %v1049, 0.0
        %v1100 = vmax.f32 %v1054, 0.0
        %v1101 = vmax.f32 %v1059, 0.0
        %v1102 = vmax.f32 %v1064, 0.0
        %v1103 = vmax.f32 %v1069, 0.0
        %v1104 = vmax.f32 %v1074, 0.0
        %v1105 = vmax.f32 %v1079, 0.0
        %v1106 = vmax.f32 %v1084, 0.0
        %v1107 = vmax.f32 %v1089, 0.0
        %v1108 = vld [vmem:[#allocation7] sm:$0xf]
        %v1109 = vld [vmem:[#allocation8] sm:$0xf]
        %1110 = vmatprep.subr.mxu0 0.0
        %1111 = vmatpush1.msra.mxu0 %v1107
        %1112 = vmatprep.subr.mxu0 0.0
        %1113 = vmatpush1.msra.mxu0 %v1106
        %1114 = vmatprep.subr.mxu0 0.0
        %1115 = vmatpush1.msra.mxu0 %v1105
        %1116 = vmatprep.subr.mxu0 0.0
        %1117 = vmatpush1.msra.mxu0 %v1104
        %1118 = vmatprep.subr.mxu0 0.0
        %1119 = vmatpush1.msra.mxu0 %v1103
        %1120 = vmatprep.subr.mxu0 0.0
        %1121 = vmatpush1.msra.mxu0 %v1102
        %1122 = vmatprep.subr.mxu0 0.0
        %1123 = vmatpush1.msra.mxu0 %v1101
        %1124 = vmatprep.subr.mxu0 0.0
        %1125 = vmatpush1.msra.mxu0 %v1100
        %1126 = vmatprep.subr.mxu0 0.0
        %1127 = vmatpush1.msra.mxu0 %v1099
        %1128 = vmatprep.subr.mxu0 0.0
        %1129 = vmatpush1.msra.mxu0 %v1098
        %1130 = vmatprep.subr.mxu0 0.0
        %1131 = vmatpush1.msra.mxu0 %v1097
        %1132 = vmatprep.subr.mxu0 0.0
        %1133 = vmatpush1.msra.mxu0 %v1096
        %1134 = vmatprep.subr.mxu0 0.0
        %1135 = vmatpush1.msra.mxu0 %v1095
        %1136 = vmatprep.subr.mxu0 0.0
        %1137 = vmatpush1.msra.mxu0 %v1094
        %1138 = vmatprep.subr.mxu0 0.0
        %1139 = vmatpush1.msra.mxu0 %v1093
        %1140 = vmatprep.subr.mxu0 0.0
        %1141 = vmatpush1.msra.mxu0 %v1092
        %1142 = vmatprep.subr.mxu0 0.0
        %1143 = vmatpush2.msra.mxu0 0.0
        %1144 = vmatprep.subr.mxu0 0.0
        %1145 = vmatpush2.msra.mxu0 0.0
        %1146 = vmatprep.subr.mxu0 0.0
        %1147 = vmatpush2.msra.mxu0 0.0
        %1148 = vmatprep.subr.mxu0 0.0
        %1149 = vmatpush2.msra.mxu0 0.0
        %1150 = vmatprep.subr.mxu0 0.0
        %1151 = vmatpush2.msra.mxu0 0.0
        %1152 = vmatprep.subr.mxu0 0.0
        %1153 = vmatpush2.msra.mxu0 0.0
        %1154 = vmatprep.subr.mxu0 0.0
        %1155 = vmatpush2.msra.mxu0 0.0
        %1156 = vmatprep.subr.mxu0 0.0
        %1157 = vmatpush2.msra.mxu0 0.0
        %1158 = vmatprep.subr.mxu0 0.0
        %1159 = vmatpush2.msra.mxu0 0.0
        %1160 = vmatprep.subr.mxu0 0.0
        %1161 = vmatpush2.msra.mxu0 0.0
        %1162 = vmatprep.subr.mxu0 0.0
        %1163 = vmatpush2.msra.mxu0 0.0
        %1164 = vmatprep.subr.mxu0 0.0
        %1165 = vmatpush2.msra.mxu0 0.0
        %1166 = vmatprep.subr.mxu0 0.0
        %1167 = vmatpush2.msra.mxu0 0.0
        %1168 = vmatprep.subr.mxu0 0.0
        %1169 = vmatpush2.msra.mxu0 0.0
        %1170 = vmatprep.subr.mxu0 0.0
        %1171 = vmatpush2.msra.mxu0 0.0
        %1172 = vmatprep.subr.mxu0 0.0
        %1173 = vmatpush2.msra.mxu0 0.0
        %1174 = vmatprep.mubr.f32.mxu0 0.0
        %1175 = vmatmul.mubr.f32.gmra.mxu0 %v1108
        %v1176 = vpop.f32.mrf.mxu0
        %v1177 = vadd.f32 %v1109, %v1176
        %v1178 = vpop.f32.mrf.mxu0
        %1179 = vdwg.mxu0
        %v1180 = vlaneseq
        %v1181 = vshrl.u32 %v1180, 7
        %vm1182 = vcmp.lt.s32.totalorder %v1181, 3
        %v1183 = vxor.u32 %v1177, 2147483648
        %v1184 = vmul.f32 %v1183, 1.442695
        %v1185 = vpow.pop %v1184
        %v1186 = vadd.f32 %v1185, 1.0
        %v1187 = vrcp.pop %v1186
        %v1188 = vmul.f32 1.0, %v1187
        %v1189 = vmax.f32 %v1177, 0.0
        %v1190 = vsel %vm1182, %v1188, %v1189
        %1191 = vst [vmem:[%s306] sm:$0xf] %v1190
        %s1192 = sand.u32 %s164, 1
        %s1193 = scalar_lea.sflag [#allocation4], %s1192
        %s1194 = sand.u32 %s164, 1
        %s1195 = smul.addr %s1194, 4
        %s1196 = scalar_lea.vmem [#allocation10], %s1195
        // Predicated region
        $region61: #{barf_forward_fm.1} parent=43 // pred_check
          %p1197 = pneg %p174
        $region62: #{barf_forward_fm.1} parent=43 // pred_check_branch
          %1199 = sbr.rel (%p1197) target = $region64
        $region63: #{barf_forward_fm.1} parent=43 // pred_region
          %s1201 = ssub.s32 64, 64
          %1202 = vsyncadd %s1193, %s1201
          %s1203 = smul.addr %s25, 64
          %s1204 = scalar_lea.hbm %s6, %s1203
          %s1206 = sshll.u32 %s1196, 4
          %s1207 = int_to_ptr.vmem [resolvable:$true] %s1206
          %1209 = dma.vmem_to_hbm [thread:$0]  %s1207, 64, %s1204, %s1193
        $region64: #{barf_forward_fm.1} parent=43 // pred_fallthru
          _
      $region44: #{barf_forward_fm.1} parent=5 // pred_fallthru
        _
      %p1210 = scmp.le.s32.totalorder 2, %s20
      // Predicated region
      $region65: #{barf_forward_fm.1} parent=5 // pred_check
        %p1211 = pneg %p1210
      $region66: #{barf_forward_fm.1} parent=5 // pred_check_branch
        %1213 = sbr.rel (%p1211) target = $region68
      $region67: #{barf_forward_fm.1} parent=5 // pred_region
        %s1214 = ssub.s32 %s20, 2
        // Predicated region
        $region69: #{barf_forward_fm.1} parent=67 // pred_check
          %p1215 = pneg %p180
        $region70: #{barf_forward_fm.1} parent=67 // pred_check_branch
          %1217 = sbr.rel (%p1215) target = $region72
        $region71: #{barf_forward_fm.1} parent=67 // pred_region
          %s1218 = sand.u32 %s165, 1
          %s1219 = scalar_lea.sflag [#allocation4], %s1218
          %s1220 = sand.u32 %s165, 1
          %s1221 = smul.addr %s1220, 4
          %s1222 = scalar_lea.vmem [#allocation10], %s1221
          %1223 = dma.done %s1219, 64
        $region72: #{barf_forward_fm.1} parent=67 // pred_fallthru
          _
      $region68: #{barf_forward_fm.1} parent=5 // pred_fallthru
        _
    $region6: #{barf_forward_fm.1} parent=1 // loop_footer
      %s24 = sadd.s32 1, %s20
    $region7: #{barf_forward_fm.1} parent=1 // loop_footer_branch
      %19 = sbr.rel target = $region3
    $region8: #{barf_forward_fm.1} parent=1 // loop_exit
      _
    %1224 = vsyncpa [#allocation3], 1
    %s1225 = scalar_lea.sflag [#allocation3], 1
    %1226 = vsyncpa %s1225, 1
    %1227 = vsyncpa [#allocation6], 1
    %1228 = vsyncpa [#allocation9], 1
    %1229 = vsyncpa [#allocation4], 1
    %s1230 = scalar_lea.sflag [#allocation4], 1
    %1231 = vsyncpa %s1230, 1

</llo_original>
